<compile_context>
chip_gen: v7x
topology: tpu7x:2x2x1
jax: 0.10.0
libtpu: 0.0.40
codegen_flags: <defaults>
</compile_context>

<pallas_src>
import jax
import jax.numpy as jnp
from jax.experimental import pallas as pl
from jax.experimental.pallas import tpu as pltpu

NUM_LANDMARKS = 33
LANDMARK_DIM = 4
LANDMARK_FEAT = 16
INPUT_SIZE = NUM_LANDMARKS * LANDMARK_DIM      # 132
LF_FLAT = NUM_LANDMARKS * LANDMARK_FEAT        # 528
ATT_HIDDEN = 8
ATT_FLAT = NUM_LANDMARKS * ATT_HIDDEN          # 264
ATT_LANES = 128                                # 33 per-landmark logits padded to 128 lanes
NUM_CLASSES = 107
PADDED_CLASSES = 128                           # lane-dense output (pad 107 -> 128)
BN_EPS = 1e-5
MAX_BATCH_TILE = 512


def _round_up(v, m):
    return ((v + m - 1) // m) * m


def _fused_kernel(x_ref,
                  wlp_ref, blp_ref,
                  wa1_ref, ba1_ref,
                  wa2_ref, ba2_ref,
                  wrep_ref,
                  w1_ref, b1_ref,
                  w2_ref, b2_ref,
                  w3_ref, b3_ref,
                  w4_ref, b4_ref,
                  o_ref):
    """Whole forward pass for one batch tile; all operands resident in VMEM."""
    f32 = jnp.float32
    bf16 = jnp.bfloat16

    x = x_ref[...]                                                    # (TB, 132) f32

    # Per-landmark Linear(4,16) as one block-diagonal bf16 matmul -> (TB, 528).
    lf = jnp.dot(x.astype(bf16), wlp_ref[...],
                 preferred_element_type=f32) + blp_ref[...]

    # Attention MLP per landmark: Linear(16,8) -> ReLU -> Linear(8,1) -> Sigmoid.
    a1 = jnp.maximum(
        jnp.dot(lf.astype(bf16), wa1_ref[...],
                preferred_element_type=f32) + ba1_ref[...], 0.0)      # (TB, 264)
    # Compact logits: one per landmark, zero-padded to 128 lanes.
    logits = jnp.dot(a1.astype(bf16), wa2_ref[...],
                     preferred_element_type=f32) + ba2_ref[...]       # (TB, 128)
    att33 = pl.reciprocal(1.0 + jnp.exp(-logits), approx=True)        # sigmoid, f32
    # Broadcast each landmark's weight onto its 16 feature lanes (0/1 matmul).
    att = jnp.dot(att33.astype(bf16), wrep_ref[...],
                  preferred_element_type=f32)                         # (TB, 528)

    attended = lf * att                                               # (TB, 528) f32

    # Classifier: Linear->ReLU->[BN folded into next W]->Dropout(id), x3, then head.
    h = jnp.maximum(
        jnp.dot(attended.astype(bf16), w1_ref[...],
                preferred_element_type=f32) + b1_ref[...], 0.0)       # (TB, 256)
    h = jnp.maximum(
        jnp.dot(h.astype(bf16), w2_ref[...],
                preferred_element_type=f32) + b2_ref[...], 0.0)       # (TB, 128)
    h = jnp.maximum(
        jnp.dot(h.astype(bf16), w3_ref[...],
                preferred_element_type=f32) + b3_ref[...], 0.0)       # (TB, 64)
    out = jnp.dot(h.astype(bf16), w4_ref[...],
                  preferred_element_type=f32) + b4_ref[...]           # (TB, 128)
    o_ref[...] = out.astype(o_ref.dtype)                              # lane-dense store


def prepare_params(p):
    """Host-side prep: block-diag weights, BN folding, lane padding, bf16 cast."""
    eye = jnp.eye(NUM_LANDMARKS, dtype=jnp.float32)

    # Landmark processor: Linear(4,16) applied per landmark -> block-diag (132, 528).
    wlp_bd = jnp.kron(eye, p["w_lp"])
    blp = jnp.tile(p["b_lp"], NUM_LANDMARKS)

    # Attention first layer: Linear(16,8) per landmark -> block-diag (528, 264).
    wa1_bd = jnp.kron(eye, p["w_a1"])
    ba1 = jnp.tile(p["b_a1"], NUM_LANDMARKS)

    # Attention logit layer (compact): Linear(8,1) per landmark -> block-diag
    # (264, 33), zero-padded to 128 output lanes.
    wa2_bd = jnp.pad(jnp.kron(eye, p["w_a2"]),
                     ((0, 0), (0, ATT_LANES - NUM_LANDMARKS)))        # (264, 128)
    ba2 = jnp.pad(jnp.broadcast_to(p["b_a2"], (NUM_LANDMARKS,)),
                  (0, ATT_LANES - NUM_LANDMARKS))                     # (128,)

    # 0/1 replication matrix: landmark lane l -> feature lanes [16l, 16l+16).
    wrep = jnp.pad(jnp.kron(eye, jnp.ones((1, LANDMARK_FEAT), jnp.float32)),
                   ((0, ATT_LANES - NUM_LANDMARKS), (0, 0)))          # (128, 528)

    # Fold eval-mode BatchNorm1d into the following Linear's weight & bias.
    def bn_fold(stats):
        gamma, beta, mean, var = stats
        s = gamma * jax.lax.rsqrt(var + BN_EPS)
        return s, beta - mean * s

    s1, t1 = bn_fold(p["bn1"])
    w2f = s1[:, None] * p["w2"]
    b2f = t1 @ p["w2"] + p["b2"]
    s2, t2 = bn_fold(p["bn2"])
    w3f = s2[:, None] * p["w3"]
    b3f = t2 @ p["w3"] + p["b3"]
    s3, t3 = bn_fold(p["bn3"])
    w4f = s3[:, None] * p["w4"]
    b4f = t3 @ p["w4"] + p["b4"]

    # Pad the head to 128 output lanes with zero columns (sliced off outside).
    w4p = jnp.pad(w4f, ((0, 0), (0, PADDED_CLASSES - NUM_CLASSES)))
    b4p = jnp.pad(b4f, (0, PADDED_CLASSES - NUM_CLASSES))

    bf16 = jnp.bfloat16
    return (
        wlp_bd.astype(bf16), blp.reshape(1, -1),
        wa1_bd.astype(bf16), ba1.reshape(1, -1),
        wa2_bd.astype(bf16), ba2.reshape(1, -1),
        wrep.astype(bf16),
        p["w1"].astype(bf16), p["b1"].reshape(1, -1),
        w2f.astype(bf16), b2f.reshape(1, -1),
        w3f.astype(bf16), b3f.reshape(1, -1),
        w4p.astype(bf16), b4p.reshape(1, -1),
    )


def _forward_impl(x, prepared):
    B = x.shape[0]

    # Batch tile: for B > 128 ensure >= 2 grid steps (multiple of 128 rows) so
    # the "parallel" axis shards across both v7x TensorCores; small batches run
    # as a single padded tile (rows padded to a sublane multiple of 8).
    if B <= 128:
        TB = _round_up(B, 8)
    else:
        TB = min(MAX_BATCH_TILE, _round_up(pl.cdiv(B, 2), 128))
    B_pad = _round_up(B, TB)
    if B_pad != B:
        x = jnp.pad(x, ((0, B_pad - B), (0, 0)))
    grid = (B_pad // TB,)

    # Activations tiled over the batch; weights/biases use constant index_maps
    # so they stay VMEM-resident across batch tiles.
    in_specs = [pl.BlockSpec((TB, INPUT_SIZE), lambda i: (i, 0))]
    in_specs += [pl.BlockSpec(a.shape, lambda i: (0, 0)) for a in prepared]
    out_spec = pl.BlockSpec((TB, PADDED_CLASSES), lambda i: (i, 0))

    flops = 2 * B_pad * sum(int(a.shape[0]) * int(a.shape[1])
                            for a in prepared if a.shape[0] > 1)
    bytes_accessed = (int(x.size) * x.dtype.itemsize
                      + sum(int(a.size) * a.dtype.itemsize for a in prepared)
                      + B_pad * PADDED_CLASSES * 4)
    cost = pl.CostEstimate(flops=flops, transcendentals=2 * B_pad * ATT_LANES,
                           bytes_accessed=int(bytes_accessed))

    out_padded = pl.pallas_call(
        _fused_kernel,
        out_shape=jax.ShapeDtypeStruct((B_pad, PADDED_CLASSES), jnp.float32),
        grid_spec=pltpu.PrefetchScalarGridSpec(
            num_scalar_prefetch=0,
            grid=grid,
            in_specs=in_specs,
            out_specs=out_spec,
        ),
        compiler_params=pltpu.CompilerParams(dimension_semantics=("parallel",)),
        cost_estimate=cost,
    )(x, *prepared)
    return out_padded[:B, :NUM_CLASSES]


yoga_pose_classifier_forward = jax.jit(_forward_impl)


def init_params(key):
    """Deterministic synthetic parameters (same shapes as the PyTorch module)."""
    keys = list(jax.random.split(key, 32))
    ki = [0]

    def nxt():
        k = keys[ki[0]]
        ki[0] += 1
        return k

    def linear(din, dout):
        bound = 1.0 / (din ** 0.5)
        w = jax.random.uniform(nxt(), (din, dout), jnp.float32, -bound, bound)
        b = jax.random.uniform(nxt(), (dout,), jnp.float32, -bound, bound)
        return w, b

    p = {}
    p["w_lp"], p["b_lp"] = linear(LANDMARK_DIM, LANDMARK_FEAT)      # (4, 16)
    p["w_a1"], p["b_a1"] = linear(LANDMARK_FEAT, ATT_HIDDEN)        # (16, 8)
    p["w_a2"], p["b_a2"] = linear(ATT_HIDDEN, 1)                    # (8, 1)
    p["w1"], p["b1"] = linear(LF_FLAT, 256)                         # (528, 256)
    p["w2"], p["b2"] = linear(256, 128)
    p["w3"], p["b3"] = linear(128, 64)
    p["w4"], p["b4"] = linear(64, NUM_CLASSES)                      # (64, 107)

    for i, n in enumerate((256, 128, 64), start=1):
        gamma = 1.0 + 0.1 * jax.random.uniform(nxt(), (n,), jnp.float32)
        beta = 0.1 * jax.random.normal(nxt(), (n,), jnp.float32)
        rmean = 0.1 * jax.random.normal(nxt(), (n,), jnp.float32)
        rvar = 1.0 + 0.1 * jax.random.uniform(nxt(), (n,), jnp.float32)
        p[f"bn{i}"] = (gamma, beta, rmean, rvar)
    return p


def _reference_forward(x, params):
    """Plain-JAX reference implementing the PyTorch module (eval mode) verbatim."""
    B = x.shape[0]
    xl = x.reshape(B, NUM_LANDMARKS, LANDMARK_DIM)
    lf = xl @ params["w_lp"] + params["b_lp"]                        # (B, 33, 16)
    a = jnp.maximum(lf @ params["w_a1"] + params["b_a1"], 0.0)       # (B, 33, 8)
    att = jax.nn.sigmoid(a @ params["w_a2"] + params["b_a2"])        # (B, 33, 1)
    flat = (lf * att).reshape(B, -1)                                 # (B, 528)

    def bn(h, stats):
        gamma, beta, mean, var = stats
        return (h - mean) * jax.lax.rsqrt(var + BN_EPS) * gamma + beta

    h = bn(jnp.maximum(flat @ params["w1"] + params["b1"], 0.0), params["bn1"])
    h = bn(jnp.maximum(h @ params["w2"] + params["b2"], 0.0), params["bn2"])
    h = bn(jnp.maximum(h @ params["w3"] + params["b3"], 0.0), params["bn3"])
    return h @ params["w4"] + params["b4"]


if __name__ == "__main__":
    key = jax.random.PRNGKey(0)
    pkey, xkey = jax.random.split(key)
    params = init_params(pkey)
    prepared = prepare_params(params)

    batch = 8
    x = jax.random.normal(xkey, (batch, INPUT_SIZE), jnp.float32)

    out = yoga_pose_classifier_forward(x, prepared)
    out = jax.block_until_ready(out)

    ref = _reference_forward(x, params)
    assert out.shape == (batch, NUM_CLASSES)
    assert bool(jnp.all(jnp.isfinite(out)))
    max_err = float(jnp.max(jnp.abs(out - ref)))
    # bf16 weights / approx-sigmoid vs. f32 reference -> loosened tolerance.
    assert jnp.allclose(out, ref, atol=3e-2, rtol=3e-2), f"max_err={max_err}"

    print("KERNEL_OK")
</pallas_src>

<mosaic_0001>
module attributes {stable_mosaic.version = 11 : i64} {
  func.func @_fused_kernel(%arg0: i32, %arg1: memref<8x132xf32, #tpu.memory_space<vmem>>, %arg2: memref<132x528xbf16, #tpu.memory_space<vmem>>, %arg3: memref<1x528xf32, #tpu.memory_space<vmem>>, %arg4: memref<528x264xbf16, #tpu.memory_space<vmem>>, %arg5: memref<1x264xf32, #tpu.memory_space<vmem>>, %arg6: memref<264x128xbf16, #tpu.memory_space<vmem>>, %arg7: memref<1x128xf32, #tpu.memory_space<vmem>>, %arg8: memref<128x528xbf16, #tpu.memory_space<vmem>>, %arg9: memref<528x256xbf16, #tpu.memory_space<vmem>>, %arg10: memref<1x256xf32, #tpu.memory_space<vmem>>, %arg11: memref<256x128xbf16, #tpu.memory_space<vmem>>, %arg12: memref<1x128xf32, #tpu.memory_space<vmem>>, %arg13: memref<128x64xbf16, #tpu.memory_space<vmem>>, %arg14: memref<1x64xf32, #tpu.memory_space<vmem>>, %arg15: memref<64x128xbf16, #tpu.memory_space<vmem>>, %arg16: memref<1x128xf32, #tpu.memory_space<vmem>>, %arg17: memref<8x128xf32, #tpu.memory_space<vmem>>) attributes {dimension_semantics = [#tpu.dimension_semantics<parallel>], iteration_bounds = array<i64: 1>, scalar_prefetch = 0 : i64, scratch_operands = 0 : i64, tpu.core_type = #tpu.core_type<tc>, window_params = [{transform_indices = @transform_0, window_bounds = array<i64: 8, 132>}, {pipeline_mode = #tpu.pipeline_mode<synchronous>, transform_indices = @transform_1, window_bounds = array<i64: 132, 528>}, {pipeline_mode = #tpu.pipeline_mode<synchronous>, transform_indices = @transform_2, window_bounds = array<i64: 1, 528>}, {pipeline_mode = #tpu.pipeline_mode<synchronous>, transform_indices = @transform_3, window_bounds = array<i64: 528, 264>}, {pipeline_mode = #tpu.pipeline_mode<synchronous>, transform_indices = @transform_4, window_bounds = array<i64: 1, 264>}, {pipeline_mode = #tpu.pipeline_mode<synchronous>, transform_indices = @transform_5, window_bounds = array<i64: 264, 128>}, {pipeline_mode = #tpu.pipeline_mode<synchronous>, transform_indices = @transform_6, window_bounds = array<i64: 1, 128>}, {pipeline_mode = #tpu.pipeline_mode<synchronous>, transform_indices = @transform_7, window_bounds = array<i64: 128, 528>}, {pipeline_mode = #tpu.pipeline_mode<synchronous>, transform_indices = @transform_8, window_bounds = array<i64: 528, 256>}, {pipeline_mode = #tpu.pipeline_mode<synchronous>, transform_indices = @transform_9, window_bounds = array<i64: 1, 256>}, {pipeline_mode = #tpu.pipeline_mode<synchronous>, transform_indices = @transform_10, window_bounds = array<i64: 256, 128>}, {pipeline_mode = #tpu.pipeline_mode<synchronous>, transform_indices = @transform_11, window_bounds = array<i64: 1, 128>}, {pipeline_mode = #tpu.pipeline_mode<synchronous>, transform_indices = @transform_12, window_bounds = array<i64: 128, 64>}, {pipeline_mode = #tpu.pipeline_mode<synchronous>, transform_indices = @transform_13, window_bounds = array<i64: 1, 64>}, {pipeline_mode = #tpu.pipeline_mode<synchronous>, transform_indices = @transform_14, window_bounds = array<i64: 64, 128>}, {pipeline_mode = #tpu.pipeline_mode<synchronous>, transform_indices = @transform_15, window_bounds = array<i64: 1, 128>}, {transform_indices = @transform_16, window_bounds = array<i64: 8, 128>}]} {
    %c0 = arith.constant 0 : index
    %c0_0 = arith.constant 0 : index
    %0 = vector.load %arg1[%c0, %c0_0] : memref<8x132xf32, #tpu.memory_space<vmem>>, vector<8x132xf32>
    %1 = arith.truncf %0 : vector<8x132xf32> to vector<8x132xbf16>
    %c0_1 = arith.constant 0 : index
    %c0_2 = arith.constant 0 : index
    %2 = vector.load %arg2[%c0_1, %c0_2] : memref<132x528xbf16, #tpu.memory_space<vmem>>, vector<132x528xbf16>
    %cst = arith.constant dense<0.000000e+00> : vector<8x528xf32>
    %3 = tpu.matmul %1, %2, %cst {dimension_numbers = #tpu.dot_dimension_numbers<[1], [0], [0], [1], [0, 0, 1, 1], [], []>} : vector<8x132xbf16>, vector<132x528xbf16>, vector<8x528xf32> -> vector<8x528xf32>
    %c0_3 = arith.constant 0 : index
    %c0_4 = arith.constant 0 : index
    %4 = vector.load %arg3[%c0_3, %c0_4] : memref<1x528xf32, #tpu.memory_space<vmem>>, vector<1x528xf32>
    %5 = vector.broadcast %4 : vector<1x528xf32> to vector<8x528xf32>
    %6 = arith.addf %3, %5 : vector<8x528xf32>
    %7 = arith.truncf %6 : vector<8x528xf32> to vector<8x528xbf16>
    %c0_5 = arith.constant 0 : index
    %c0_6 = arith.constant 0 : index
    %8 = vector.load %arg4[%c0_5, %c0_6] : memref<528x264xbf16, #tpu.memory_space<vmem>>, vector<528x264xbf16>
    %cst_7 = arith.constant dense<0.000000e+00> : vector<8x264xf32>
    %9 = tpu.matmul %7, %8, %cst_7 {dimension_numbers = #tpu.dot_dimension_numbers<[1], [0], [0], [1], [0, 0, 1, 1], [], []>} : vector<8x528xbf16>, vector<528x264xbf16>, vector<8x264xf32> -> vector<8x264xf32>
    %c0_8 = arith.constant 0 : index
    %c0_9 = arith.constant 0 : index
    %10 = vector.load %arg5[%c0_8, %c0_9] : memref<1x264xf32, #tpu.memory_space<vmem>>, vector<1x264xf32>
    %11 = vector.broadcast %10 : vector<1x264xf32> to vector<8x264xf32>
    %12 = arith.addf %9, %11 : vector<8x264xf32>
    %cst_10 = arith.constant 0.000000e+00 : f32
    %13 = vector.broadcast %cst_10 : f32 to vector<8x264xf32>
    %14 = arith.maximumf %12, %13 : vector<8x264xf32>
    %15 = arith.truncf %14 : vector<8x264xf32> to vector<8x264xbf16>
    %c0_11 = arith.constant 0 : index
    %c0_12 = arith.constant 0 : index
    %16 = vector.load %arg6[%c0_11, %c0_12] : memref<264x128xbf16, #tpu.memory_space<vmem>>, vector<264x128xbf16>
    %cst_13 = arith.constant dense<0.000000e+00> : vector<8x128xf32>
    %17 = tpu.matmul %15, %16, %cst_13 {dimension_numbers = #tpu.dot_dimension_numbers<[1], [0], [0], [1], [0, 0, 1, 1], [], []>} : vector<8x264xbf16>, vector<264x128xbf16>, vector<8x128xf32> -> vector<8x128xf32>
    %c0_14 = arith.constant 0 : index
    %c0_15 = arith.constant 0 : index
    %18 = vector.load %arg7[%c0_14, %c0_15] : memref<1x128xf32, #tpu.memory_space<vmem>>, vector<1x128xf32>
    %19 = vector.broadcast %18 : vector<1x128xf32> to vector<8x128xf32>
    %20 = arith.addf %17, %19 : vector<8x128xf32>
    %cst_16 = arith.constant 0.000000e+00 : f32
    %21 = vector.broadcast %cst_16 : f32 to vector<8x128xf32>
    %22 = arith.subf %21, %20 : vector<8x128xf32>
    %23 = math.exp %22 : vector<8x128xf32>
    %cst_17 = arith.constant 1.000000e+00 : f32
    %24 = vector.broadcast %cst_17 : f32 to vector<8x128xf32>
    %25 = arith.addf %24, %23 : vector<8x128xf32>
    %26 = tpu.reciprocal %25 {approx = true} : vector<8x128xf32> -> vector<8x128xf32>
    %27 = arith.truncf %26 : vector<8x128xf32> to vector<8x128xbf16>
    %c0_18 = arith.constant 0 : index
    %c0_19 = arith.constant 0 : index
    %28 = vector.load %arg8[%c0_18, %c0_19] : memref<128x528xbf16, #tpu.memory_space<vmem>>, vector<128x528xbf16>
    %cst_20 = arith.constant dense<0.000000e+00> : vector<8x528xf32>
    %29 = tpu.matmul %27, %28, %cst_20 {dimension_numbers = #tpu.dot_dimension_numbers<[1], [0], [0], [1], [0, 0, 1, 1], [], []>} : vector<8x128xbf16>, vector<128x528xbf16>, vector<8x528xf32> -> vector<8x528xf32>
    %30 = arith.mulf %6, %29 : vector<8x528xf32>
    %31 = arith.truncf %30 : vector<8x528xf32> to vector<8x528xbf16>
    %c0_21 = arith.constant 0 : index
    %c0_22 = arith.constant 0 : index
    %32 = vector.load %arg9[%c0_21, %c0_22] : memref<528x256xbf16, #tpu.memory_space<vmem>>, vector<528x256xbf16>
    %cst_23 = arith.constant dense<0.000000e+00> : vector<8x256xf32>
    %33 = tpu.matmul %31, %32, %cst_23 {dimension_numbers = #tpu.dot_dimension_numbers<[1], [0], [0], [1], [0, 0, 1, 1], [], []>} : vector<8x528xbf16>, vector<528x256xbf16>, vector<8x256xf32> -> vector<8x256xf32>
    %c0_24 = arith.constant 0 : index
    %c0_25 = arith.constant 0 : index
    %34 = vector.load %arg10[%c0_24, %c0_25] : memref<1x256xf32, #tpu.memory_space<vmem>>, vector<1x256xf32>
    %35 = vector.broadcast %34 : vector<1x256xf32> to vector<8x256xf32>
    %36 = arith.addf %33, %35 : vector<8x256xf32>
    %cst_26 = arith.constant 0.000000e+00 : f32
    %37 = vector.broadcast %cst_26 : f32 to vector<8x256xf32>
    %38 = arith.maximumf %36, %37 : vector<8x256xf32>
    %39 = arith.truncf %38 : vector<8x256xf32> to vector<8x256xbf16>
    %c0_27 = arith.constant 0 : index
    %c0_28 = arith.constant 0 : index
    %40 = vector.load %arg11[%c0_27, %c0_28] : memref<256x128xbf16, #tpu.memory_space<vmem>>, vector<256x128xbf16>
    %cst_29 = arith.constant dense<0.000000e+00> : vector<8x128xf32>
    %41 = tpu.matmul %39, %40, %cst_29 {dimension_numbers = #tpu.dot_dimension_numbers<[1], [0], [0], [1], [0, 0, 1, 1], [], []>} : vector<8x256xbf16>, vector<256x128xbf16>, vector<8x128xf32> -> vector<8x128xf32>
    %c0_30 = arith.constant 0 : index
    %c0_31 = arith.constant 0 : index
    %42 = vector.load %arg12[%c0_30, %c0_31] : memref<1x128xf32, #tpu.memory_space<vmem>>, vector<1x128xf32>
    %43 = vector.broadcast %42 : vector<1x128xf32> to vector<8x128xf32>
    %44 = arith.addf %41, %43 : vector<8x128xf32>
    %cst_32 = arith.constant 0.000000e+00 : f32
    %45 = vector.broadcast %cst_32 : f32 to vector<8x128xf32>
    %46 = arith.maximumf %44, %45 : vector<8x128xf32>
    %47 = arith.truncf %46 : vector<8x128xf32> to vector<8x128xbf16>
    %c0_33 = arith.constant 0 : index
    %c0_34 = arith.constant 0 : index
    %48 = vector.load %arg13[%c0_33, %c0_34] : memref<128x64xbf16, #tpu.memory_space<vmem>>, vector<128x64xbf16>
    %cst_35 = arith.constant dense<0.000000e+00> : vector<8x64xf32>
    %49 = tpu.matmul %47, %48, %cst_35 {dimension_numbers = #tpu.dot_dimension_numbers<[1], [0], [0], [1], [0, 0, 1, 1], [], []>} : vector<8x128xbf16>, vector<128x64xbf16>, vector<8x64xf32> -> vector<8x64xf32>
    %c0_36 = arith.constant 0 : index
    %c0_37 = arith.constant 0 : index
    %50 = vector.load %arg14[%c0_36, %c0_37] : memref<1x64xf32, #tpu.memory_space<vmem>>, vector<1x64xf32>
    %51 = vector.broadcast %50 : vector<1x64xf32> to vector<8x64xf32>
    %52 = arith.addf %49, %51 : vector<8x64xf32>
    %cst_38 = arith.constant 0.000000e+00 : f32
    %53 = vector.broadcast %cst_38 : f32 to vector<8x64xf32>
    %54 = arith.maximumf %52, %53 : vector<8x64xf32>
    %55 = arith.truncf %54 : vector<8x64xf32> to vector<8x64xbf16>
    %c0_39 = arith.constant 0 : index
    %c0_40 = arith.constant 0 : index
    %56 = vector.load %arg15[%c0_39, %c0_40] : memref<64x128xbf16, #tpu.memory_space<vmem>>, vector<64x128xbf16>
    %cst_41 = arith.constant dense<0.000000e+00> : vector<8x128xf32>
    %57 = tpu.matmul %55, %56, %cst_41 {dimension_numbers = #tpu.dot_dimension_numbers<[1], [0], [0], [1], [0, 0, 1, 1], [], []>} : vector<8x64xbf16>, vector<64x128xbf16>, vector<8x128xf32> -> vector<8x128xf32>
    %c0_42 = arith.constant 0 : index
    %c0_43 = arith.constant 0 : index
    %58 = vector.load %arg16[%c0_42, %c0_43] : memref<1x128xf32, #tpu.memory_space<vmem>>, vector<1x128xf32>
    %59 = vector.broadcast %58 : vector<1x128xf32> to vector<8x128xf32>
    %60 = arith.addf %57, %59 : vector<8x128xf32>
    %c0_44 = arith.constant 0 : index
    %c0_45 = arith.constant 0 : index
    %61 = vector.load %arg17[%c0_44, %c0_45] : memref<8x128xf32, #tpu.memory_space<vmem>>, vector<8x128xf32>
    tpu.vector_store %arg17[%c0_44, %c0_45], %60 {strides = array<i32>} : memref<8x128xf32, #tpu.memory_space<vmem>>, vector<8x128xf32>,
    return
  }
  func.func @transform_0(%arg0: i32) -> (i32, i32) {
    %c0_i32 = arith.constant 0 : i32
    %c0_i32_0 = arith.constant 0 : i32
    return %arg0, %c0_i32 : i32, i32
  }
  func.func @transform_1(%arg0: i32) -> (i32, i32) {
    %c0_i32 = arith.constant 0 : i32
    %c0_i32_0 = arith.constant 0 : i32
    %c0_i32_1 = arith.constant 0 : i32
    return %c0_i32, %c0_i32_0 : i32, i32
  }
  func.func @transform_2(%arg0: i32) -> (i32, i32) {
    %c0_i32 = arith.constant 0 : i32
    %c0_i32_0 = arith.constant 0 : i32
    %c0_i32_1 = arith.constant 0 : i32
    return %c0_i32, %c0_i32_0 : i32, i32
  }
  func.func @transform_3(%arg0: i32) -> (i32, i32) {
    %c0_i32 = arith.constant 0 : i32
    %c0_i32_0 = arith.constant 0 : i32
    %c0_i32_1 = arith.constant 0 : i32
    return %c0_i32, %c0_i32_0 : i32, i32
  }
  func.func @transform_4(%arg0: i32) -> (i32, i32) {
    %c0_i32 = arith.constant 0 : i32
    %c0_i32_0 = arith.constant 0 : i32
    %c0_i32_1 = arith.constant 0 : i32
    return %c0_i32, %c0_i32_0 : i32, i32
  }
  func.func @transform_5(%arg0: i32) -> (i32, i32) {
    %c0_i32 = arith.constant 0 : i32
    %c0_i32_0 = arith.constant 0 : i32
    %c0_i32_1 = arith.constant 0 : i32
    return %c0_i32, %c0_i32_0 : i32, i32
  }
  func.func @transform_6(%arg0: i32) -> (i32, i32) {
    %c0_i32 = arith.constant 0 : i32
    %c0_i32_0 = arith.constant 0 : i32
    %c0_i32_1 = arith.constant 0 : i32
    return %c0_i32, %c0_i32_0 : i32, i32
  }
  func.func @transform_7(%arg0: i32) -> (i32, i32) {
    %c0_i32 = arith.constant 0 : i32
    %c0_i32_0 = arith.constant 0 : i32
    %c0_i32_1 = arith.constant 0 : i32
    return %c0_i32, %c0_i32_0 : i32, i32
  }
  func.func @transform_8(%arg0: i32) -> (i32, i32) {
    %c0_i32 = arith.constant 0 : i32
    %c0_i32_0 = arith.constant 0 : i32
    %c0_i32_1 = arith.constant 0 : i32
    return %c0_i32, %c0_i32_0 : i32, i32
  }
  func.func @transform_9(%arg0: i32) -> (i32, i32) {
    %c0_i32 = arith.constant 0 : i32
    %c0_i32_0 = arith.constant 0 : i32
    %c0_i32_1 = arith.constant 0 : i32
    return %c0_i32, %c0_i32_0 : i32, i32
  }
  func.func @transform_10(%arg0: i32) -> (i32, i32) {
    %c0_i32 = arith.constant 0 : i32
    %c0_i32_0 = arith.constant 0 : i32
    %c0_i32_1 = arith.constant 0 : i32
    return %c0_i32, %c0_i32_0 : i32, i32
  }
  func.func @transform_11(%arg0: i32) -> (i32, i32) {
    %c0_i32 = arith.constant 0 : i32
    %c0_i32_0 = arith.constant 0 : i32
    %c0_i32_1 = arith.constant 0 : i32
    return %c0_i32, %c0_i32_0 : i32, i32
  }
  func.func @transform_12(%arg0: i32) -> (i32, i32) {
    %c0_i32 = arith.constant 0 : i32
    %c0_i32_0 = arith.constant 0 : i32
    %c0_i32_1 = arith.constant 0 : i32
    return %c0_i32, %c0_i32_0 : i32, i32
  }
  func.func @transform_13(%arg0: i32) -> (i32, i32) {
    %c0_i32 = arith.constant 0 : i32
    %c0_i32_0 = arith.constant 0 : i32
    %c0_i32_1 = arith.constant 0 : i32
    return %c0_i32, %c0_i32_0 : i32, i32
  }
  func.func @transform_14(%arg0: i32) -> (i32, i32) {
    %c0_i32 = arith.constant 0 : i32
    %c0_i32_0 = arith.constant 0 : i32
    %c0_i32_1 = arith.constant 0 : i32
    return %c0_i32, %c0_i32_0 : i32, i32
  }
  func.func @transform_15(%arg0: i32) -> (i32, i32) {
    %c0_i32 = arith.constant 0 : i32
    %c0_i32_0 = arith.constant 0 : i32
    %c0_i32_1 = arith.constant 0 : i32
    return %c0_i32, %c0_i32_0 : i32, i32
  }
  func.func @transform_16(%arg0: i32) -> (i32, i32) {
    %c0_i32 = arith.constant 0 : i32
    %c0_i32_0 = arith.constant 0 : i32
    return %arg0, %c0_i32 : i32, i32
  }
}

</mosaic_0001>

<llo_original>
// kernel: _forward_impl.1
$region0: #{_forward_impl.1}
  #allocation0 [shape = 'u32[]', space=smem, size = 0x4, offset = 0x4, fixed_abs, tag = 'smem constant byte address 0x4 - core index']
  #allocation1 [shape = 'u32[144,128]{1,0:T(1,128)}', space=vmem, size = 0x12000, scoped, tag = 'internal scratch']
  %s0 = inlined_call_operand.vmem [shape: f32[8,132], index: 0, kind: input, shape index: {}]
  %s1 = inlined_call_operand.vmem [shape: bf16[132,528], index: 1, kind: input, shape index: {}]
  %s2 = inlined_call_operand.vmem [shape: f32[1,528], index: 2, kind: input, shape index: {}]
  %s3 = inlined_call_operand.vmem [shape: bf16[528,264], index: 3, kind: input, shape index: {}]
  %s4 = inlined_call_operand.vmem [shape: f32[1,264], index: 4, kind: input, shape index: {}]
  %s5 = inlined_call_operand.vmem [shape: bf16[264,128], index: 5, kind: input, shape index: {}]
  %s6 = inlined_call_operand.vmem [shape: f32[1,128], index: 6, kind: input, shape index: {}]
  %s7 = inlined_call_operand.vmem [shape: bf16[128,528], index: 7, kind: input, shape index: {}]
  %s8 = inlined_call_operand.vmem [shape: bf16[528,256], index: 8, kind: input, shape index: {}]
  %s9 = inlined_call_operand.vmem [shape: f32[1,256], index: 9, kind: input, shape index: {}]
  %s10 = inlined_call_operand.vmem [shape: bf16[256,128], index: 10, kind: input, shape index: {}]
  %s11 = inlined_call_operand.vmem [shape: f32[1,128], index: 11, kind: input, shape index: {}]
  %s12 = inlined_call_operand.vmem [shape: bf16[128,64], index: 12, kind: input, shape index: {}]
  %s13 = inlined_call_operand.vmem [shape: f32[1,64], index: 13, kind: input, shape index: {}]
  %s14 = inlined_call_operand.vmem [shape: bf16[64,128], index: 14, kind: input, shape index: {}]
  %s15 = inlined_call_operand.vmem [shape: f32[1,128], index: 15, kind: input, shape index: {}]
  %s16 = inlined_call_operand.hbm [shape: f32[8,128], index: 16, kind: output, shape index: {}]
  %s17 = sld [smem:[#allocation0]]
  $region74: #{_forward_impl.1} parent=0
    _
  %s19 = ssub.s32 1, %s17
  %s20 = scalar_select 0, %s19, %s17
  $region1: #{_forward_impl.1} parent=0
    #allocation2 [shape = 'u8[4096]{0}', space=vmem, size = 0x1000, scoped, tag = 'output window, operand 0, single buffered']
    #allocation3 [shape = 's32[1]{0}', space=sflag, size = 0x4, scoped, tag = 'scoped memory for _forward_impl.1']
    %21 = vsyncpa [#allocation3], 0
    // Predicated region
    $region2: #{_forward_impl.1} parent=1 // pred_check
      _
    $region3: #{_forward_impl.1} parent=1 // pred_check_branch
      %23 = sbr.rel (0) target = $region5
    $region4: #{_forward_impl.1} parent=1 // pred_region
      _
    $region5: #{_forward_impl.1} parent=1 // pred_fallthru
      _
    // Predicated region
    $region6: #{_forward_impl.1} parent=1 // pred_check
      _
    $region7: #{_forward_impl.1} parent=1 // pred_check_branch
      %25 = sbr.rel (0) target = $region9
    $region8: #{_forward_impl.1} parent=1 // pred_region
      _
    $region9: #{_forward_impl.1} parent=1 // pred_fallthru
      _
    // Predicated region
    $region10: #{_forward_impl.1} parent=1 // pred_check
      _
    $region11: #{_forward_impl.1} parent=1 // pred_check_branch
      %27 = sbr.rel (0) target = $region13
    $region12: #{_forward_impl.1} parent=1 // pred_region
      _
    $region13: #{_forward_impl.1} parent=1 // pred_fallthru
      _
    // Predicated region
    $region14: #{_forward_impl.1} parent=1 // pred_check
      _
    $region15: #{_forward_impl.1} parent=1 // pred_check_branch
      %29 = sbr.rel (0) target = $region17
    $region16: #{_forward_impl.1} parent=1 // pred_region
      _
    $region17: #{_forward_impl.1} parent=1 // pred_fallthru
      _
    // Predicated region
    $region18: #{_forward_impl.1} parent=1 // pred_check
      _
    $region19: #{_forward_impl.1} parent=1 // pred_check_branch
      %31 = sbr.rel (0) target = $region21
    $region20: #{_forward_impl.1} parent=1 // pred_region
      _
    $region21: #{_forward_impl.1} parent=1 // pred_fallthru
      _
    // Predicated region
    $region22: #{_forward_impl.1} parent=1 // pred_check
      _
    $region23: #{_forward_impl.1} parent=1 // pred_check_branch
      %33 = sbr.rel (0) target = $region25
    $region24: #{_forward_impl.1} parent=1 // pred_region
      _
    $region25: #{_forward_impl.1} parent=1 // pred_fallthru
      _
    // Predicated region
    $region26: #{_forward_impl.1} parent=1 // pred_check
      _
    $region27: #{_forward_impl.1} parent=1 // pred_check_branch
      %35 = sbr.rel (0) target = $region29
    $region28: #{_forward_impl.1} parent=1 // pred_region
      _
    $region29: #{_forward_impl.1} parent=1 // pred_fallthru
      _
    // Predicated region
    $region30: #{_forward_impl.1} parent=1 // pred_check
      _
    $region31: #{_forward_impl.1} parent=1 // pred_check_branch
      %37 = sbr.rel (0) target = $region33
    $region32: #{_forward_impl.1} parent=1 // pred_region
      _
    $region33: #{_forward_impl.1} parent=1 // pred_fallthru
      _
    // Predicated region
    $region34: #{_forward_impl.1} parent=1 // pred_check
      _
    $region35: #{_forward_impl.1} parent=1 // pred_check_branch
      %39 = sbr.rel (0) target = $region37
    $region36: #{_forward_impl.1} parent=1 // pred_region
      _
    $region37: #{_forward_impl.1} parent=1 // pred_fallthru
      _
    // Predicated region
    $region38: #{_forward_impl.1} parent=1 // pred_check
      _
    $region39: #{_forward_impl.1} parent=1 // pred_check_branch
      %41 = sbr.rel (0) target = $region41
    $region40: #{_forward_impl.1} parent=1 // pred_region
      _
    $region41: #{_forward_impl.1} parent=1 // pred_fallthru
      _
    // Predicated region
    $region42: #{_forward_impl.1} parent=1 // pred_check
      _
    $region43: #{_forward_impl.1} parent=1 // pred_check_branch
      %43 = sbr.rel (0) target = $region45
    $region44: #{_forward_impl.1} parent=1 // pred_region
      _
    $region45: #{_forward_impl.1} parent=1 // pred_fallthru
      _
    // Predicated region
    $region46: #{_forward_impl.1} parent=1 // pred_check
      _
    $region47: #{_forward_impl.1} parent=1 // pred_check_branch
      %45 = sbr.rel (0) target = $region49
    $region48: #{_forward_impl.1} parent=1 // pred_region
      _
    $region49: #{_forward_impl.1} parent=1 // pred_fallthru
      _
    // Predicated region
    $region50: #{_forward_impl.1} parent=1 // pred_check
      _
    $region51: #{_forward_impl.1} parent=1 // pred_check_branch
      %47 = sbr.rel (0) target = $region53
    $region52: #{_forward_impl.1} parent=1 // pred_region
      _
    $region53: #{_forward_impl.1} parent=1 // pred_fallthru
      _
    // Predicated region
    $region54: #{_forward_impl.1} parent=1 // pred_check
      _
    $region55: #{_forward_impl.1} parent=1 // pred_check_branch
      %49 = sbr.rel (0) target = $region57
    $region56: #{_forward_impl.1} parent=1 // pred_region
      _
    $region57: #{_forward_impl.1} parent=1 // pred_fallthru
      _
    // Predicated region
    $region58: #{_forward_impl.1} parent=1 // pred_check
      _
    $region59: #{_forward_impl.1} parent=1 // pred_check_branch
      %51 = sbr.rel (0) target = $region61
    $region60: #{_forward_impl.1} parent=1 // pred_region
      _
    $region61: #{_forward_impl.1} parent=1 // pred_fallthru
      _
    // Predicated region
    $region62: #{_forward_impl.1} parent=1 // pred_check
      _
    $region63: #{_forward_impl.1} parent=1 // pred_check_branch
      %53 = sbr.rel (0) target = $region65
    $region64: #{_forward_impl.1} parent=1 // pred_region
      _
    $region65: #{_forward_impl.1} parent=1 // pred_fallthru
      _
    %v55 = vld [vmem:[%s0] sm:$0xff]
    %v56 = vld [vmem:[%s0 + $0x8] sm:$0xff]
    %v57 = vpack.c.bf16 %v55, %v55
    %v58 = vpack.c.bf16 %v56, %v56
    %v59 = vld [vmem:[%s1] sm:$0xff]
    %v60 = vld [vmem:[%s1 + $0x8] sm:$0xff]
    %v61 = vld [vmem:[%s1 + $0x10] sm:$0xf]
    %v62 = vld [vmem:[%s1 + $0x14] sm:$0xff]
    %v63 = vld [vmem:[%s1 + $0x1c] sm:$0xff]
    %v64 = vld [vmem:[%s1 + $0x24] sm:$0xf]
    %v65 = vld [vmem:[%s1 + $0x28] sm:$0xff]
    %v66 = vld [vmem:[%s1 + $0x30] sm:$0xff]
    %v67 = vld [vmem:[%s1 + $0x38] sm:$0xf]
    %v68 = vld [vmem:[%s1 + $0x3c] sm:$0xff]
    %v69 = vld [vmem:[%s1 + $0x44] sm:$0xff]
    %v70 = vld [vmem:[%s1 + $0x4c] sm:$0xf]
    %v71 = vld [vmem:[%s1 + $0x50] sm:$0xff]
    %v72 = vld [vmem:[%s1 + $0x58] sm:$0xff]
    %v73 = vld [vmem:[%s1 + $0x60] sm:$0xf]
    %v74 = vld [vmem:[%s1 + $0x64] sm:$0xff]
    %v75 = vld [vmem:[%s1 + $0x6c] sm:$0xff]
    %v76 = vld [vmem:[%s1 + $0x74] sm:$0xf]
    %v77 = vld [vmem:[%s1 + $0x78] sm:$0xff]
    %v78 = vld [vmem:[%s1 + $0x80] sm:$0xff]
    %v79 = vld [vmem:[%s1 + $0x88] sm:$0xf]
    %v80 = vld [vmem:[%s1 + $0x8c] sm:$0xff]
    %v81 = vld [vmem:[%s1 + $0x94] sm:$0xff]
    %v82 = vld [vmem:[%s1 + $0x9c] sm:$0xf]
    %v83 = vld [vmem:[%s1 + $0xa0] sm:$0xff]
    %v84 = vld [vmem:[%s1 + $0xa8] sm:$0xff]
    %v85 = vld [vmem:[%s1 + $0xb0] sm:$0xf]
    %v86 = vld [vmem:[%s1 + $0xb4] sm:$0xff]
    %v87 = vld [vmem:[%s1 + $0xbc] sm:$0xff]
    %v88 = vld [vmem:[%s1 + $0xc4] sm:$0xf]
    %v89 = vld [vmem:[%s1 + $0xc8] sm:$0xff]
    %v90 = vld [vmem:[%s1 + $0xd0] sm:$0xff]
    %v91 = vld [vmem:[%s1 + $0xd8] sm:$0xf]
    %v92 = vld [vmem:[%s1 + $0xdc] sm:$0xff]
    %v93 = vld [vmem:[%s1 + $0xe4] sm:$0xff]
    %v94 = vld [vmem:[%s1 + $0xec] sm:$0xf]
    %v95 = vld [vmem:[%s1 + $0xf0] sm:$0xff]
    %v96 = vld [vmem:[%s1 + $0xf8] sm:$0xff]
    %v97 = vld [vmem:[%s1 + $0x100] sm:$0xf]
    %v98 = vld [vmem:[%s1 + $0x104] sm:$0xff]
    %v99 = vld [vmem:[%s1 + $0x10c] sm:$0xff]
    %v100 = vld [vmem:[%s1 + $0x114] sm:$0xf]
    %v101 = vld [vmem:[%s1 + $0x118] sm:$0xff]
    %v102 = vld [vmem:[%s1 + $0x120] sm:$0xff]
    %v103 = vld [vmem:[%s1 + $0x128] sm:$0xf]
    %v104 = vld [vmem:[%s1 + $0x12c] sm:$0xff]
    %v105 = vld [vmem:[%s1 + $0x134] sm:$0xff]
    %v106 = vld [vmem:[%s1 + $0x13c] sm:$0xf]
    %v107 = vld [vmem:[%s1 + $0x140] sm:$0x33]
    %v108 = vld [vmem:[%s1 + $0x148] sm:$0x33]
    %v109 = vld [vmem:[%s1 + $0x150] sm:$0x3]
    %v110 = vld [vmem:[%s2] sm:$0x1f]
    %v112 = vlaneseq
    %v113 = vshrl.u32 %v112, 7
    %v114 = vsub.s32 0, %v113
    %v115 = vrot.slane %v110, %v114
    %v116 = vlaneseq
    %v117 = vshrl.u32 %v116, 7
    %v118 = vsub.s32 1, %v117
    %v119 = vrot.slane %v110, %v118
    %v120 = vlaneseq
    %v121 = vshrl.u32 %v120, 7
    %v122 = vsub.s32 2, %v121
    %v123 = vrot.slane %v110, %v122
    %v124 = vlaneseq
    %v125 = vshrl.u32 %v124, 7
    %v126 = vsub.s32 3, %v125
    %v127 = vrot.slane %v110, %v126
    %v128 = vlaneseq
    %v129 = vshrl.u32 %v128, 7
    %v130 = vsub.s32 4, %v129
    %v131 = vrot.slane %v110, %v130
    %v188 = vunpack.c.l.b16 %v59
    %v189 = vunpack.c.h.b16 %v59
    %v190 = vunpack.c.l.b16 %v60
    %v191 = vunpack.c.h.b16 %v60
    %v192 = vunpack.c.l.b16 %v61
    %v193 = vunpack.c.l.b16 %v62
    %v194 = vunpack.c.h.b16 %v62
    %v195 = vunpack.c.l.b16 %v63
    %v196 = vunpack.c.h.b16 %v63
    %v197 = vunpack.c.l.b16 %v64
    %v198 = vunpack.c.l.b16 %v65
    %v199 = vunpack.c.h.b16 %v65
    %v200 = vunpack.c.l.b16 %v66
    %v201 = vunpack.c.h.b16 %v66
    %v202 = vunpack.c.l.b16 %v67
    %v203 = vunpack.c.l.b16 %v68
    %v204 = vunpack.c.h.b16 %v68
    %v205 = vunpack.c.l.b16 %v69
    %v206 = vunpack.c.h.b16 %v69
    %v207 = vunpack.c.l.b16 %v70
    %v208 = vunpack.c.l.b16 %v71
    %v209 = vunpack.c.h.b16 %v71
    %v210 = vunpack.c.l.b16 %v72
    %v211 = vunpack.c.h.b16 %v72
    %v212 = vunpack.c.l.b16 %v73
    %v213 = vunpack.c.l.b16 %v74
    %v214 = vunpack.c.h.b16 %v74
    %v215 = vunpack.c.l.b16 %v75
    %v216 = vunpack.c.h.b16 %v75
    %v217 = vunpack.c.l.b16 %v76
    %v218 = vunpack.c.l.b16 %v77
    %v219 = vunpack.c.h.b16 %v77
    %v220 = vunpack.c.l.b16 %v78
    %v221 = vunpack.c.h.b16 %v78
    %v222 = vunpack.c.l.b16 %v79
    %v223 = vunpack.c.l.b16 %v80
    %v224 = vunpack.c.h.b16 %v80
    %v225 = vunpack.c.l.b16 %v81
    %v226 = vunpack.c.h.b16 %v81
    %v227 = vunpack.c.l.b16 %v82
    %v228 = vunpack.c.l.b16 %v83
    %v229 = vunpack.c.h.b16 %v83
    %v230 = vunpack.c.l.b16 %v84
    %v231 = vunpack.c.h.b16 %v84
    %v232 = vunpack.c.l.b16 %v85
    %v233 = vunpack.c.l.b16 %v86
    %v234 = vunpack.c.h.b16 %v86
    %v235 = vunpack.c.l.b16 %v87
    %v236 = vunpack.c.h.b16 %v87
    %v237 = vunpack.c.l.b16 %v88
    %v238 = vunpack.c.l.b16 %v89
    %v239 = vunpack.c.h.b16 %v89
    %v240 = vunpack.c.l.b16 %v90
    %v241 = vunpack.c.h.b16 %v90
    %v242 = vunpack.c.l.b16 %v91
    %v243 = vunpack.c.l.b16 %v92
    %v244 = vunpack.c.h.b16 %v92
    %v245 = vunpack.c.l.b16 %v93
    %v246 = vunpack.c.h.b16 %v93
    %v247 = vunpack.c.l.b16 %v94
    %v248 = vunpack.c.l.b16 %v95
    %v249 = vunpack.c.h.b16 %v95
    %v250 = vunpack.c.l.b16 %v96
    %v251 = vunpack.c.h.b16 %v96
    %v252 = vunpack.c.l.b16 %v97
    %v253 = vunpack.c.l.b16 %v98
    %v254 = vunpack.c.h.b16 %v98
    %v255 = vunpack.c.l.b16 %v99
    %v256 = vunpack.c.h.b16 %v99
    %v257 = vunpack.c.l.b16 %v100
    %v258 = vunpack.c.l.b16 %v101
    %v259 = vunpack.c.h.b16 %v101
    %v260 = vunpack.c.l.b16 %v102
    %v261 = vunpack.c.h.b16 %v102
    %v262 = vunpack.c.l.b16 %v103
    %v263 = vunpack.c.l.b16 %v104
    %v264 = vunpack.c.h.b16 %v104
    %v265 = vunpack.c.l.b16 %v105
    %v266 = vunpack.c.h.b16 %v105
    %v267 = vunpack.c.l.b16 %v106
    %v268 = vunpack.c.l.b16 %v107
    %v269 = vunpack.c.h.b16 %v107
    %v270 = vunpack.c.l.b16 %v108
    %v271 = vunpack.c.h.b16 %v108
    %v272 = vunpack.c.l.b16 %v109
    %v273 = vpack.c.b16 %v193, %v188
    %v274 = vpack.c.b16 %v194, %v189
    %v275 = vpack.c.b16 %v195, %v190
    %v276 = vpack.c.b16 %v196, %v191
    %v277 = vpack.c.b16 %v197, %v192
    %v278 = vpack.c.b16 %v203, %v198
    %v279 = vpack.c.b16 %v204, %v199
    %v280 = vpack.c.b16 %v205, %v200
    %v281 = vpack.c.b16 %v206, %v201
    %v282 = vpack.c.b16 %v207, %v202
    %v283 = vpack.c.b16 %v213, %v208
    %v284 = vpack.c.b16 %v214, %v209
    %v285 = vpack.c.b16 %v215, %v210
    %v286 = vpack.c.b16 %v216, %v211
    %v287 = vpack.c.b16 %v217, %v212
    %v288 = vpack.c.b16 %v223, %v218
    %v289 = vpack.c.b16 %v224, %v219
    %v290 = vpack.c.b16 %v225, %v220
    %v291 = vpack.c.b16 %v226, %v221
    %v292 = vpack.c.b16 %v227, %v222
    %v293 = vpack.c.b16 %v233, %v228
    %v294 = vpack.c.b16 %v234, %v229
    %v295 = vpack.c.b16 %v235, %v230
    %v296 = vpack.c.b16 %v236, %v231
    %v297 = vpack.c.b16 %v237, %v232
    %v298 = vpack.c.b16 %v243, %v238
    %v299 = vpack.c.b16 %v244, %v239
    %v300 = vpack.c.b16 %v245, %v240
    %v301 = vpack.c.b16 %v246, %v241
    %v302 = vpack.c.b16 %v247, %v242
    %v303 = vpack.c.b16 %v253, %v248
    %v304 = vpack.c.b16 %v254, %v249
    %v305 = vpack.c.b16 %v255, %v250
    %v306 = vpack.c.b16 %v256, %v251
    %v307 = vpack.c.b16 %v257, %v252
    %v308 = vpack.c.b16 %v263, %v258
    %v309 = vpack.c.b16 %v264, %v259
    %v310 = vpack.c.b16 %v265, %v260
    %v311 = vpack.c.b16 %v266, %v261
    %v312 = vpack.c.b16 %v267, %v262
    %v313 = vpack.c.b16 %v268, %v268
    %v314 = vpack.c.b16 %v269, %v269
    %v315 = vpack.c.b16 %v270, %v270
    %v316 = vpack.c.b16 %v271, %v271
    %v317 = vpack.c.b16 %v272, %v272
    %vm358 = vcmask 31744
    %v360 = vsel %vm358, %v58, 0
    %vm362 = vcmask 1041408
    %v364 = vsel %vm362, %v313, 0
    %v367 = vsel %vm362, %v314, 0
    %v370 = vsel %vm362, %v315, 0
    %v373 = vsel %vm362, %v316, 0
    %v376 = vsel %vm362, %v317, 0
    %378 = vmatprep.subr.bf16.mxu0 %v274
    %379 = vmatpush1.bf16.msra.mxu0 %v273
    %380 = vmatprep.subr.bf16.mxu0 %v279
    %381 = vmatpush1.bf16.msra.mxu0 %v278
    %382 = vmatprep.subr.bf16.mxu0 %v284
    %383 = vmatpush1.bf16.msra.mxu0 %v283
    %384 = vmatprep.subr.bf16.mxu0 %v289
    %385 = vmatpush1.bf16.msra.mxu0 %v288
    %386 = vmatprep.subr.bf16.mxu0 %v294
    %387 = vmatpush1.bf16.msra.mxu0 %v293
    %388 = vmatprep.subr.bf16.mxu0 %v299
    %389 = vmatpush1.bf16.msra.mxu0 %v298
    %390 = vmatprep.subr.bf16.mxu0 %v304
    %391 = vmatpush1.bf16.msra.mxu0 %v303
    %392 = vmatprep.subr.bf16.mxu0 %v309
    %393 = vmatpush1.bf16.msra.mxu0 %v308
    %394 = vmatprep.subr.bf16.mxu0 %v367
    %395 = vmatpush1.bf16.msra.mxu0 %v364
    %396 = vmatprep.subr.bf16.mxu0 0
    %397 = vmatpush1.bf16.msra.mxu0 0
    %398 = vmatprep.subr.bf16.mxu0 0
    %399 = vmatpush1.bf16.msra.mxu0 0
    %400 = vmatprep.subr.bf16.mxu0 0
    %401 = vmatpush1.bf16.msra.mxu0 0
    %402 = vmatprep.subr.bf16.mxu0 0
    %403 = vmatpush1.bf16.msra.mxu0 0
    %404 = vmatprep.subr.bf16.mxu0 0
    %405 = vmatpush1.bf16.msra.mxu0 0
    %406 = vmatprep.subr.bf16.mxu0 0
    %407 = vmatpush1.bf16.msra.mxu0 0
    %408 = vmatprep.subr.bf16.mxu0 0
    %409 = vmatpush1.bf16.msra.mxu0 0
    %410 = vmatprep.mubr.bf16.mxu0 %v360
    %411 = vmatmul.mubr.bf16.gmra.mrb[0].mxu0 %v57
    %v412 = vpop.f32.mrb[0].mxu0
    %v413 = vadd.f32 %v115, %v412
    %v414 = vpop.f32.mrb[0].mxu0
    %v415 = vadd.f32 %v119, %v414
    %v416 = vpop.f32.mrb[0].mxu0
    %v417 = vpop.f32.mrb[0].mxu0
    %418 = vdwg.mxu0
    %419 = vmatprep.subr.bf16.mxu0 %v276
    %420 = vmatpush1.bf16.msra.mxu0 %v275
    %421 = vmatprep.subr.bf16.mxu0 %v281
    %422 = vmatpush1.bf16.msra.mxu0 %v280
    %423 = vmatprep.subr.bf16.mxu0 %v286
    %424 = vmatpush1.bf16.msra.mxu0 %v285
    %425 = vmatprep.subr.bf16.mxu0 %v291
    %426 = vmatpush1.bf16.msra.mxu0 %v290
    %427 = vmatprep.subr.bf16.mxu0 %v296
    %428 = vmatpush1.bf16.msra.mxu0 %v295
    %429 = vmatprep.subr.bf16.mxu0 %v301
    %430 = vmatpush1.bf16.msra.mxu0 %v300
    %431 = vmatprep.subr.bf16.mxu0 %v306
    %432 = vmatpush1.bf16.msra.mxu0 %v305
    %433 = vmatprep.subr.bf16.mxu0 %v311
    %434 = vmatpush1.bf16.msra.mxu0 %v310
    %435 = vmatprep.subr.bf16.mxu0 %v373
    %436 = vmatpush1.bf16.msra.mxu0 %v370
    %437 = vmatprep.subr.bf16.mxu0 0
    %438 = vmatpush1.bf16.msra.mxu0 0
    %439 = vmatprep.subr.bf16.mxu0 0
    %440 = vmatpush1.bf16.msra.mxu0 0
    %441 = vmatprep.subr.bf16.mxu0 0
    %442 = vmatpush1.bf16.msra.mxu0 0
    %443 = vmatprep.subr.bf16.mxu0 0
    %444 = vmatpush1.bf16.msra.mxu0 0
    %445 = vmatprep.subr.bf16.mxu0 0
    %446 = vmatpush1.bf16.msra.mxu0 0
    %447 = vmatprep.subr.bf16.mxu0 0
    %448 = vmatpush1.bf16.msra.mxu0 0
    %449 = vmatprep.subr.bf16.mxu0 0
    %450 = vmatpush1.bf16.msra.mxu0 0
    %451 = vmatprep.mubr.bf16.mxu0 %v360
    %452 = vmatmul.mubr.bf16.gmra.mrb[0].mxu0 %v57
    %v453 = vpop.f32.mrb[0].mxu0
    %v454 = vadd.f32 %v123, %v453
    %v455 = vpop.f32.mrb[0].mxu0
    %v456 = vadd.f32 %v127, %v455
    %v457 = vpop.f32.mrb[0].mxu0
    %v458 = vpop.f32.mrb[0].mxu0
    %459 = vdwg.mxu0
    %460 = vmatprep.subr.bf16.mxu0 0
    %461 = vmatpush1.bf16.msra.mxu0 %v277
    %462 = vmatprep.subr.bf16.mxu0 0
    %463 = vmatpush1.bf16.msra.mxu0 %v282
    %464 = vmatprep.subr.bf16.mxu0 0
    %465 = vmatpush1.bf16.msra.mxu0 %v287
    %466 = vmatprep.subr.bf16.mxu0 0
    %467 = vmatpush1.bf16.msra.mxu0 %v292
    %468 = vmatprep.subr.bf16.mxu0 0
    %469 = vmatpush1.bf16.msra.mxu0 %v297
    %470 = vmatprep.subr.bf16.mxu0 0
    %471 = vmatpush1.bf16.msra.mxu0 %v302
    %472 = vmatprep.subr.bf16.mxu0 0
    %473 = vmatpush1.bf16.msra.mxu0 %v307
    %474 = vmatprep.subr.bf16.mxu0 0
    %475 = vmatpush1.bf16.msra.mxu0 %v312
    %476 = vmatprep.subr.bf16.mxu0 0
    %477 = vmatpush1.bf16.msra.mxu0 %v376
    %478 = vmatprep.subr.bf16.mxu0 0
    %479 = vmatpush1.bf16.msra.mxu0 0
    %480 = vmatprep.subr.bf16.mxu0 0
    %481 = vmatpush1.bf16.msra.mxu0 0
    %482 = vmatprep.subr.bf16.mxu0 0
    %483 = vmatpush1.bf16.msra.mxu0 0
    %484 = vmatprep.subr.bf16.mxu0 0
    %485 = vmatpush1.bf16.msra.mxu0 0
    %486 = vmatprep.subr.bf16.mxu0 0
    %487 = vmatpush1.bf16.msra.mxu0 0
    %488 = vmatprep.subr.bf16.mxu0 0
    %489 = vmatpush1.bf16.msra.mxu0 0
    %490 = vmatprep.subr.bf16.mxu0 0
    %491 = vmatpush1.bf16.msra.mxu0 0
    %492 = vmatprep.mubr.bf16.mxu0 %v360
    %493 = vmatmul.mubr.bf16.gmra.mrb[0].mxu0 %v57
    %v494 = vpop.f32.mrb[0].mxu0
    %v495 = vadd.f32 %v131, %v494
    %v496 = vpop.f32.mrb[0].mxu0
    %v497 = vpop.f32.mrb[0].mxu0
    %v498 = vpop.f32.mrb[0].mxu0
    %499 = vdwg.mxu0
    %v500 = vpack.c.bf16 %v413, %v413
    %v501 = vpack.c.bf16 %v415, %v415
    %v502 = vpack.c.bf16 %v454, %v454
    %v503 = vpack.c.bf16 %v456, %v456
    %v504 = vpack.c.bf16 %v495, %v495
    %v505 = vld [vmem:[%s3] sm:$0xff]
    %v506 = vld [vmem:[%s3 + $0x8] sm:$0xf]
    %v507 = vld [vmem:[%s3 + $0xc] sm:$0xff]
    %v508 = vld [vmem:[%s3 + $0x14] sm:$0xf]
    %v509 = vld [vmem:[%s3 + $0x18] sm:$0xff]
    %v510 = vld [vmem:[%s3 + $0x20] sm:$0xf]
    %v511 = vld [vmem:[%s3 + $0x24] sm:$0xff]
    %v512 = vld [vmem:[%s3 + $0x2c] sm:$0xf]
    %v513 = vld [vmem:[%s3 + $0x30] sm:$0xff]
    %v514 = vld [vmem:[%s3 + $0x38] sm:$0xf]
    %v515 = vld [vmem:[%s3 + $0x3c] sm:$0xff]
    %v516 = vld [vmem:[%s3 + $0x44] sm:$0xf]
    %v517 = vld [vmem:[%s3 + $0x48] sm:$0xff]
    %v518 = vld [vmem:[%s3 + $0x50] sm:$0xf]
    %v519 = vld [vmem:[%s3 + $0x54] sm:$0xff]
    %v520 = vld [vmem:[%s3 + $0x5c] sm:$0xf]
    %v521 = vld [vmem:[%s3 + $0x60] sm:$0xff]
    %v522 = vld [vmem:[%s3 + $0x68] sm:$0xf]
    %v523 = vld [vmem:[%s3 + $0x6c] sm:$0xff]
    %v524 = vld [vmem:[%s3 + $0x74] sm:$0xf]
    %v525 = vld [vmem:[%s3 + $0x78] sm:$0xff]
    %v526 = vld [vmem:[%s3 + $0x80] sm:$0xf]
    %v527 = vld [vmem:[%s3 + $0x84] sm:$0xff]
    %v528 = vld [vmem:[%s3 + $0x8c] sm:$0xf]
    %v529 = vld [vmem:[%s3 + $0x90] sm:$0xff]
    %v530 = vld [vmem:[%s3 + $0x98] sm:$0xf]
    %v531 = vld [vmem:[%s3 + $0x9c] sm:$0xff]
    %v532 = vld [vmem:[%s3 + $0xa4] sm:$0xf]
    %v533 = vld [vmem:[%s3 + $0xa8] sm:$0xff]
    %v534 = vld [vmem:[%s3 + $0xb0] sm:$0xf]
    %v535 = vld [vmem:[%s3 + $0xb4] sm:$0xff]
    %v536 = vld [vmem:[%s3 + $0xbc] sm:$0xf]
    %v537 = vld [vmem:[%s3 + $0xc0] sm:$0xff]
    %v538 = vld [vmem:[%s3 + $0xc8] sm:$0xf]
    %v539 = vld [vmem:[%s3 + $0xcc] sm:$0xff]
    %v540 = vld [vmem:[%s3 + $0xd4] sm:$0xf]
    %v541 = vld [vmem:[%s3 + $0xd8] sm:$0xff]
    %v542 = vld [vmem:[%s3 + $0xe0] sm:$0xf]
    %v543 = vld [vmem:[%s3 + $0xe4] sm:$0xff]
    %v544 = vld [vmem:[%s3 + $0xec] sm:$0xf]
    %v545 = vld [vmem:[%s3 + $0xf0] sm:$0xff]
    %v546 = vld [vmem:[%s3 + $0xf8] sm:$0xf]
    %v547 = vld [vmem:[%s3 + $0xfc] sm:$0xff]
    %v548 = vld [vmem:[%s3 + $0x104] sm:$0xf]
    %v549 = vld [vmem:[%s3 + $0x108] sm:$0xff]
    %v550 = vld [vmem:[%s3 + $0x110] sm:$0xf]
    %v551 = vld [vmem:[%s3 + $0x114] sm:$0xff]
    %v552 = vld [vmem:[%s3 + $0x11c] sm:$0xf]
    %v553 = vld [vmem:[%s3 + $0x120] sm:$0xff]
    %v554 = vld [vmem:[%s3 + $0x128] sm:$0xf]
    %v555 = vld [vmem:[%s3 + $0x12c] sm:$0xff]
    %v556 = vld [vmem:[%s3 + $0x134] sm:$0xf]
    %v557 = vld [vmem:[%s3 + $0x138] sm:$0xff]
    %v558 = vld [vmem:[%s3 + $0x140] sm:$0xf]
    %v559 = vld [vmem:[%s3 + $0x144] sm:$0xff]
    %v560 = vld [vmem:[%s3 + $0x14c] sm:$0xf]
    %v561 = vld [vmem:[%s3 + $0x150] sm:$0xff]
    %v562 = vld [vmem:[%s3 + $0x158] sm:$0xf]
    %v563 = vld [vmem:[%s3 + $0x15c] sm:$0xff]
    %v564 = vld [vmem:[%s3 + $0x164] sm:$0xf]
    %v565 = vld [vmem:[%s3 + $0x168] sm:$0xff]
    %v566 = vld [vmem:[%s3 + $0x170] sm:$0xf]
    %v567 = vld [vmem:[%s3 + $0x174] sm:$0xff]
    %v568 = vld [vmem:[%s3 + $0x17c] sm:$0xf]
    %v569 = vld [vmem:[%s3 + $0x180] sm:$0xff]
    %v570 = vld [vmem:[%s3 + $0x188] sm:$0xf]
    %v571 = vld [vmem:[%s3 + $0x18c] sm:$0xff]
    %v572 = vld [vmem:[%s3 + $0x194] sm:$0xf]
    %v573 = vld [vmem:[%s3 + $0x198] sm:$0xff]
    %v574 = vld [vmem:[%s3 + $0x1a0] sm:$0xf]
    %v575 = vld [vmem:[%s3 + $0x1a4] sm:$0xff]
    %v576 = vld [vmem:[%s3 + $0x1ac] sm:$0xf]
    %v577 = vld [vmem:[%s3 + $0x1b0] sm:$0xff]
    %v578 = vld [vmem:[%s3 + $0x1b8] sm:$0xf]
    %v579 = vld [vmem:[%s3 + $0x1bc] sm:$0xff]
    %v580 = vld [vmem:[%s3 + $0x1c4] sm:$0xf]
    %v581 = vld [vmem:[%s3 + $0x1c8] sm:$0xff]
    %v582 = vld [vmem:[%s3 + $0x1d0] sm:$0xf]
    %v583 = vld [vmem:[%s3 + $0x1d4] sm:$0xff]
    %v584 = vld [vmem:[%s3 + $0x1dc] sm:$0xf]
    %v585 = vld [vmem:[%s3 + $0x1e0] sm:$0xff]
    %v586 = vld [vmem:[%s3 + $0x1e8] sm:$0xf]
    %v587 = vld [vmem:[%s3 + $0x1ec] sm:$0xff]
    %v588 = vld [vmem:[%s3 + $0x1f4] sm:$0xf]
    %v589 = vld [vmem:[%s3 + $0x1f8] sm:$0xff]
    %v590 = vld [vmem:[%s3 + $0x200] sm:$0xf]
    %v591 = vld [vmem:[%s3 + $0x204] sm:$0xff]
    %v592 = vld [vmem:[%s3 + $0x20c] sm:$0xf]
    %v593 = vld [vmem:[%s3 + $0x210] sm:$0xff]
    %v594 = vld [vmem:[%s3 + $0x218] sm:$0xf]
    %v595 = vld [vmem:[%s3 + $0x21c] sm:$0xff]
    %v596 = vld [vmem:[%s3 + $0x224] sm:$0xf]
    %v597 = vld [vmem:[%s3 + $0x228] sm:$0xff]
    %v598 = vld [vmem:[%s3 + $0x230] sm:$0xf]
    %v599 = vld [vmem:[%s3 + $0x234] sm:$0xff]
    %v600 = vld [vmem:[%s3 + $0x23c] sm:$0xf]
    %v601 = vld [vmem:[%s3 + $0x240] sm:$0xff]
    %v602 = vld [vmem:[%s3 + $0x248] sm:$0xf]
    %v603 = vld [vmem:[%s3 + $0x24c] sm:$0xff]
    %v604 = vld [vmem:[%s3 + $0x254] sm:$0xf]
    %v605 = vld [vmem:[%s3 + $0x258] sm:$0xff]
    %v606 = vld [vmem:[%s3 + $0x260] sm:$0xf]
    %v607 = vld [vmem:[%s3 + $0x264] sm:$0xff]
    %v608 = vld [vmem:[%s3 + $0x26c] sm:$0xf]
    %v609 = vld [vmem:[%s3 + $0x270] sm:$0xff]
    %v610 = vld [vmem:[%s3 + $0x278] sm:$0xf]
    %v611 = vld [vmem:[%s3 + $0x27c] sm:$0xff]
    %v612 = vld [vmem:[%s3 + $0x284] sm:$0xf]
    %v613 = vld [vmem:[%s3 + $0x288] sm:$0xff]
    %v614 = vld [vmem:[%s3 + $0x290] sm:$0xf]
    %v615 = vld [vmem:[%s3 + $0x294] sm:$0xff]
    %v616 = vld [vmem:[%s3 + $0x29c] sm:$0xf]
    %v617 = vld [vmem:[%s3 + $0x2a0] sm:$0xff]
    %v618 = vld [vmem:[%s3 + $0x2a8] sm:$0xf]
    %v619 = vld [vmem:[%s3 + $0x2ac] sm:$0xff]
    %v620 = vld [vmem:[%s3 + $0x2b4] sm:$0xf]
    %v621 = vld [vmem:[%s3 + $0x2b8] sm:$0xff]
    %v622 = vld [vmem:[%s3 + $0x2c0] sm:$0xf]
    %v623 = vld [vmem:[%s3 + $0x2c4] sm:$0xff]
    %v624 = vld [vmem:[%s3 + $0x2cc] sm:$0xf]
    %v625 = vld [vmem:[%s3 + $0x2d0] sm:$0xff]
    %v626 = vld [vmem:[%s3 + $0x2d8] sm:$0xf]
    %v627 = vld [vmem:[%s3 + $0x2dc] sm:$0xff]
    %v628 = vld [vmem:[%s3 + $0x2e4] sm:$0xf]
    %v629 = vld [vmem:[%s3 + $0x2e8] sm:$0xff]
    %v630 = vld [vmem:[%s3 + $0x2f0] sm:$0xf]
    %v631 = vld [vmem:[%s3 + $0x2f4] sm:$0xff]
    %v632 = vld [vmem:[%s3 + $0x2fc] sm:$0xf]
    %v633 = vld [vmem:[%s3 + $0x300] sm:$0xff]
    %v634 = vld [vmem:[%s3 + $0x308] sm:$0xf]
    %v635 = vld [vmem:[%s3 + $0x30c] sm:$0xff]
    %v636 = vld [vmem:[%s3 + $0x314] sm:$0xf]
    %v637 = vld [vmem:[%s4] sm:$0x7]
    %v639 = vlaneseq
    %v640 = vshrl.u32 %v639, 7
    %v641 = vsub.s32 0, %v640
    %v642 = vrot.slane %v637, %v641
    %v643 = vlaneseq
    %v644 = vshrl.u32 %v643, 7
    %v645 = vsub.s32 1, %v644
    %v646 = vrot.slane %v637, %v645
    %v647 = vlaneseq
    %v648 = vshrl.u32 %v647, 7
    %v649 = vsub.s32 2, %v648
    %v650 = vrot.slane %v637, %v649
    %v786 = vunpack.c.l.b16 %v505
    %v787 = vunpack.c.h.b16 %v505
    %v788 = vunpack.c.l.b16 %v506
    %v789 = vunpack.c.l.b16 %v507
    %v790 = vunpack.c.h.b16 %v507
    %v791 = vunpack.c.l.b16 %v508
    %v792 = vunpack.c.l.b16 %v509
    %v793 = vunpack.c.h.b16 %v509
    %v794 = vunpack.c.l.b16 %v510
    %v795 = vunpack.c.l.b16 %v511
    %v796 = vunpack.c.h.b16 %v511
    %v797 = vunpack.c.l.b16 %v512
    %v798 = vunpack.c.l.b16 %v513
    %v799 = vunpack.c.h.b16 %v513
    %v800 = vunpack.c.l.b16 %v514
    %v801 = vunpack.c.l.b16 %v515
    %v802 = vunpack.c.h.b16 %v515
    %v803 = vunpack.c.l.b16 %v516
    %v804 = vunpack.c.l.b16 %v517
    %v805 = vunpack.c.h.b16 %v517
    %v806 = vunpack.c.l.b16 %v518
    %v807 = vunpack.c.l.b16 %v519
    %v808 = vunpack.c.h.b16 %v519
    %v809 = vunpack.c.l.b16 %v520
    %v810 = vunpack.c.l.b16 %v521
    %v811 = vunpack.c.h.b16 %v521
    %v812 = vunpack.c.l.b16 %v522
    %v813 = vunpack.c.l.b16 %v523
    %v814 = vunpack.c.h.b16 %v523
    %v815 = vunpack.c.l.b16 %v524
    %v816 = vunpack.c.l.b16 %v525
    %v817 = vunpack.c.h.b16 %v525
    %v818 = vunpack.c.l.b16 %v526
    %v819 = vunpack.c.l.b16 %v527
    %v820 = vunpack.c.h.b16 %v527
    %v821 = vunpack.c.l.b16 %v528
    %v822 = vunpack.c.l.b16 %v529
    %v823 = vunpack.c.h.b16 %v529
    %v824 = vunpack.c.l.b16 %v530
    %v825 = vunpack.c.l.b16 %v531
    %v826 = vunpack.c.h.b16 %v531
    %v827 = vunpack.c.l.b16 %v532
    %v828 = vunpack.c.l.b16 %v533
    %v829 = vunpack.c.h.b16 %v533
    %v830 = vunpack.c.l.b16 %v534
    %v831 = vunpack.c.l.b16 %v535
    %v832 = vunpack.c.h.b16 %v535
    %v833 = vunpack.c.l.b16 %v536
    %v834 = vunpack.c.l.b16 %v537
    %v835 = vunpack.c.h.b16 %v537
    %v836 = vunpack.c.l.b16 %v538
    %v837 = vunpack.c.l.b16 %v539
    %v838 = vunpack.c.h.b16 %v539
    %v839 = vunpack.c.l.b16 %v540
    %v840 = vunpack.c.l.b16 %v541
    %v841 = vunpack.c.h.b16 %v541
    %v842 = vunpack.c.l.b16 %v542
    %v843 = vunpack.c.l.b16 %v543
    %v844 = vunpack.c.h.b16 %v543
    %v845 = vunpack.c.l.b16 %v544
    %v846 = vunpack.c.l.b16 %v545
    %v847 = vunpack.c.h.b16 %v545
    %v848 = vunpack.c.l.b16 %v546
    %v849 = vunpack.c.l.b16 %v547
    %v850 = vunpack.c.h.b16 %v547
    %v851 = vunpack.c.l.b16 %v548
    %v852 = vunpack.c.l.b16 %v549
    %v853 = vunpack.c.h.b16 %v549
    %v854 = vunpack.c.l.b16 %v550
    %v855 = vunpack.c.l.b16 %v551
    %v856 = vunpack.c.h.b16 %v551
    %v857 = vunpack.c.l.b16 %v552
    %v858 = vunpack.c.l.b16 %v553
    %v859 = vunpack.c.h.b16 %v553
    %v860 = vunpack.c.l.b16 %v554
    %v861 = vunpack.c.l.b16 %v555
    %v862 = vunpack.c.h.b16 %v555
    %v863 = vunpack.c.l.b16 %v556
    %v864 = vunpack.c.l.b16 %v557
    %v865 = vunpack.c.h.b16 %v557
    %v866 = vunpack.c.l.b16 %v558
    %v867 = vunpack.c.l.b16 %v559
    %v868 = vunpack.c.h.b16 %v559
    %v869 = vunpack.c.l.b16 %v560
    %v870 = vunpack.c.l.b16 %v561
    %v871 = vunpack.c.h.b16 %v561
    %v872 = vunpack.c.l.b16 %v562
    %v873 = vunpack.c.l.b16 %v563
    %v874 = vunpack.c.h.b16 %v563
    %v875 = vunpack.c.l.b16 %v564
    %v876 = vunpack.c.l.b16 %v565
    %v877 = vunpack.c.h.b16 %v565
    %v878 = vunpack.c.l.b16 %v566
    %v879 = vunpack.c.l.b16 %v567
    %v880 = vunpack.c.h.b16 %v567
    %v881 = vunpack.c.l.b16 %v568
    %v882 = vunpack.c.l.b16 %v569
    %v883 = vunpack.c.h.b16 %v569
    %v884 = vunpack.c.l.b16 %v570
    %v885 = vunpack.c.l.b16 %v571
    %v886 = vunpack.c.h.b16 %v571
    %v887 = vunpack.c.l.b16 %v572
    %v888 = vunpack.c.l.b16 %v573
    %v889 = vunpack.c.h.b16 %v573
    %v890 = vunpack.c.l.b16 %v574
    %v891 = vunpack.c.l.b16 %v575
    %v892 = vunpack.c.h.b16 %v575
    %v893 = vunpack.c.l.b16 %v576
    %v894 = vunpack.c.l.b16 %v577
    %v895 = vunpack.c.h.b16 %v577
    %v896 = vunpack.c.l.b16 %v578
    %v897 = vunpack.c.l.b16 %v579
    %v898 = vunpack.c.h.b16 %v579
    %v899 = vunpack.c.l.b16 %v580
    %v900 = vunpack.c.l.b16 %v581
    %v901 = vunpack.c.h.b16 %v581
    %v902 = vunpack.c.l.b16 %v582
    %v903 = vunpack.c.l.b16 %v583
    %v904 = vunpack.c.h.b16 %v583
    %v905 = vunpack.c.l.b16 %v584
    %v906 = vunpack.c.l.b16 %v585
    %v907 = vunpack.c.h.b16 %v585
    %v908 = vunpack.c.l.b16 %v586
    %v909 = vunpack.c.l.b16 %v587
    %v910 = vunpack.c.h.b16 %v587
    %v911 = vunpack.c.l.b16 %v588
    %v912 = vunpack.c.l.b16 %v589
    %v913 = vunpack.c.h.b16 %v589
    %v914 = vunpack.c.l.b16 %v590
    %v915 = vunpack.c.l.b16 %v591
    %v916 = vunpack.c.h.b16 %v591
    %v917 = vunpack.c.l.b16 %v592
    %v918 = vunpack.c.l.b16 %v593
    %v919 = vunpack.c.h.b16 %v593
    %v920 = vunpack.c.l.b16 %v594
    %v921 = vunpack.c.l.b16 %v595
    %v922 = vunpack.c.h.b16 %v595
    %v923 = vunpack.c.l.b16 %v596
    %v924 = vunpack.c.l.b16 %v597
    %v925 = vunpack.c.h.b16 %v597
    %v926 = vunpack.c.l.b16 %v598
    %v927 = vunpack.c.l.b16 %v599
    %v928 = vunpack.c.h.b16 %v599
    %v929 = vunpack.c.l.b16 %v600
    %v930 = vunpack.c.l.b16 %v601
    %v931 = vunpack.c.h.b16 %v601
    %v932 = vunpack.c.l.b16 %v602
    %v933 = vunpack.c.l.b16 %v603
    %v934 = vunpack.c.h.b16 %v603
    %v935 = vunpack.c.l.b16 %v604
    %v936 = vunpack.c.l.b16 %v605
    %v937 = vunpack.c.h.b16 %v605
    %v938 = vunpack.c.l.b16 %v606
    %v939 = vunpack.c.l.b16 %v607
    %v940 = vunpack.c.h.b16 %v607
    %v941 = vunpack.c.l.b16 %v608
    %v942 = vunpack.c.l.b16 %v609
    %v943 = vunpack.c.h.b16 %v609
    %v944 = vunpack.c.l.b16 %v610
    %v945 = vunpack.c.l.b16 %v611
    %v946 = vunpack.c.h.b16 %v611
    %v947 = vunpack.c.l.b16 %v612
    %v948 = vunpack.c.l.b16 %v613
    %v949 = vunpack.c.h.b16 %v613
    %v950 = vunpack.c.l.b16 %v614
    %v951 = vunpack.c.l.b16 %v615
    %v952 = vunpack.c.h.b16 %v615
    %v953 = vunpack.c.l.b16 %v616
    %v954 = vunpack.c.l.b16 %v617
    %v955 = vunpack.c.h.b16 %v617
    %v956 = vunpack.c.l.b16 %v618
    %v957 = vunpack.c.l.b16 %v619
    %v958 = vunpack.c.h.b16 %v619
    %v959 = vunpack.c.l.b16 %v620
    %v960 = vunpack.c.l.b16 %v621
    %v961 = vunpack.c.h.b16 %v621
    %v962 = vunpack.c.l.b16 %v622
    %v963 = vunpack.c.l.b16 %v623
    %v964 = vunpack.c.h.b16 %v623
    %v965 = vunpack.c.l.b16 %v624
    %v966 = vunpack.c.l.b16 %v625
    %v967 = vunpack.c.h.b16 %v625
    %v968 = vunpack.c.l.b16 %v626
    %v969 = vunpack.c.l.b16 %v627
    %v970 = vunpack.c.h.b16 %v627
    %v971 = vunpack.c.l.b16 %v628
    %v972 = vunpack.c.l.b16 %v629
    %v973 = vunpack.c.h.b16 %v629
    %v974 = vunpack.c.l.b16 %v630
    %v975 = vunpack.c.l.b16 %v631
    %v976 = vunpack.c.h.b16 %v631
    %v977 = vunpack.c.l.b16 %v632
    %v978 = vunpack.c.l.b16 %v633
    %v979 = vunpack.c.h.b16 %v633
    %v980 = vunpack.c.l.b16 %v634
    %v981 = vunpack.c.l.b16 %v635
    %v982 = vunpack.c.h.b16 %v635
    %v983 = vunpack.c.l.b16 %v636
    %v984 = vpack.c.b16 %v789, %v786
    %v985 = vpack.c.b16 %v790, %v787
    %v986 = vpack.c.b16 %v791, %v788
    %v987 = vpack.c.b16 %v795, %v792
    %v988 = vpack.c.b16 %v796, %v793
    %v989 = vpack.c.b16 %v797, %v794
    %v990 = vpack.c.b16 %v801, %v798
    %v991 = vpack.c.b16 %v802, %v799
    %v992 = vpack.c.b16 %v803, %v800
    %v993 = vpack.c.b16 %v807, %v804
    %v994 = vpack.c.b16 %v808, %v805
    %v995 = vpack.c.b16 %v809, %v806
    %v996 = vpack.c.b16 %v813, %v810
    %v997 = vpack.c.b16 %v814, %v811
    %v998 = vpack.c.b16 %v815, %v812
    %v999 = vpack.c.b16 %v819, %v816
    %v1000 = vpack.c.b16 %v820, %v817
    %v1001 = vpack.c.b16 %v821, %v818
    %v1002 = vpack.c.b16 %v825, %v822
    %v1003 = vpack.c.b16 %v826, %v823
    %v1004 = vpack.c.b16 %v827, %v824
    %v1005 = vpack.c.b16 %v831, %v828
    %v1006 = vpack.c.b16 %v832, %v829
    %v1007 = vpack.c.b16 %v833, %v830
    %v1008 = vpack.c.b16 %v837, %v834
    %v1009 = vpack.c.b16 %v838, %v835
    %v1010 = vpack.c.b16 %v839, %v836
    %v1011 = vpack.c.b16 %v843, %v840
    %v1012 = vpack.c.b16 %v844, %v841
    %v1013 = vpack.c.b16 %v845, %v842
    %v1014 = vpack.c.b16 %v849, %v846
    %v1015 = vpack.c.b16 %v850, %v847
    %v1016 = vpack.c.b16 %v851, %v848
    %v1017 = vpack.c.b16 %v855, %v852
    %v1018 = vpack.c.b16 %v856, %v853
    %v1019 = vpack.c.b16 %v857, %v854
    %v1020 = vpack.c.b16 %v861, %v858
    %v1021 = vpack.c.b16 %v862, %v859
    %v1022 = vpack.c.b16 %v863, %v860
    %v1023 = vpack.c.b16 %v867, %v864
    %v1024 = vpack.c.b16 %v868, %v865
    %v1025 = vpack.c.b16 %v869, %v866
    %v1026 = vpack.c.b16 %v873, %v870
    %v1027 = vpack.c.b16 %v874, %v871
    %v1028 = vpack.c.b16 %v875, %v872
    %v1029 = vpack.c.b16 %v879, %v876
    %v1030 = vpack.c.b16 %v880, %v877
    %v1031 = vpack.c.b16 %v881, %v878
    %v1032 = vpack.c.b16 %v885, %v882
    %v1033 = vpack.c.b16 %v886, %v883
    %v1034 = vpack.c.b16 %v887, %v884
    %v1035 = vpack.c.b16 %v891, %v888
    %v1036 = vpack.c.b16 %v892, %v889
    %v1037 = vpack.c.b16 %v893, %v890
    %v1038 = vpack.c.b16 %v897, %v894
    %v1039 = vpack.c.b16 %v898, %v895
    %v1040 = vpack.c.b16 %v899, %v896
    %v1041 = vpack.c.b16 %v903, %v900
    %v1042 = vpack.c.b16 %v904, %v901
    %v1043 = vpack.c.b16 %v905, %v902
    %v1044 = vpack.c.b16 %v909, %v906
    %v1045 = vpack.c.b16 %v910, %v907
    %v1046 = vpack.c.b16 %v911, %v908
    %v1047 = vpack.c.b16 %v915, %v912
    %v1048 = vpack.c.b16 %v916, %v913
    %v1049 = vpack.c.b16 %v917, %v914
    %v1050 = vpack.c.b16 %v921, %v918
    %v1051 = vpack.c.b16 %v922, %v919
    %v1052 = vpack.c.b16 %v923, %v920
    %v1053 = vpack.c.b16 %v927, %v924
    %v1054 = vpack.c.b16 %v928, %v925
    %v1055 = vpack.c.b16 %v929, %v926
    %v1056 = vpack.c.b16 %v933, %v930
    %v1057 = vpack.c.b16 %v934, %v931
    %v1058 = vpack.c.b16 %v935, %v932
    %v1059 = vpack.c.b16 %v939, %v936
    %v1060 = vpack.c.b16 %v940, %v937
    %v1061 = vpack.c.b16 %v941, %v938
    %v1062 = vpack.c.b16 %v945, %v942
    %v1063 = vpack.c.b16 %v946, %v943
    %v1064 = vpack.c.b16 %v947, %v944
    %v1065 = vpack.c.b16 %v951, %v948
    %v1066 = vpack.c.b16 %v952, %v949
    %v1067 = vpack.c.b16 %v953, %v950
    %v1068 = vpack.c.b16 %v957, %v954
    %v1069 = vpack.c.b16 %v958, %v955
    %v1070 = vpack.c.b16 %v959, %v956
    %v1071 = vpack.c.b16 %v963, %v960
    %v1072 = vpack.c.b16 %v964, %v961
    %v1073 = vpack.c.b16 %v965, %v962
    %v1074 = vpack.c.b16 %v969, %v966
    %v1075 = vpack.c.b16 %v970, %v967
    %v1076 = vpack.c.b16 %v971, %v968
    %v1077 = vpack.c.b16 %v975, %v972
    %v1078 = vpack.c.b16 %v976, %v973
    %v1079 = vpack.c.b16 %v977, %v974
    %v1080 = vpack.c.b16 %v981, %v978
    %v1081 = vpack.c.b16 %v982, %v979
    %v1082 = vpack.c.b16 %v983, %v980
    %vm1182 = vcmask 130048
    %v1184 = vsel %vm1182, %v504, 0
    %1186 = vmatprep.subr.bf16.mxu0 %v985
    %1187 = vmatpush1.bf16.msra.mxu0 %v984
    %1188 = vmatprep.subr.bf16.mxu0 %v988
    %1189 = vmatpush1.bf16.msra.mxu0 %v987
    %1190 = vmatprep.subr.bf16.mxu0 %v991
    %1191 = vmatpush1.bf16.msra.mxu0 %v990
    %1192 = vmatprep.subr.bf16.mxu0 %v994
    %1193 = vmatpush1.bf16.msra.mxu0 %v993
    %1194 = vmatprep.subr.bf16.mxu0 %v997
    %1195 = vmatpush1.bf16.msra.mxu0 %v996
    %1196 = vmatprep.subr.bf16.mxu0 %v1000
    %1197 = vmatpush1.bf16.msra.mxu0 %v999
    %1198 = vmatprep.subr.bf16.mxu0 %v1003
    %1199 = vmatpush1.bf16.msra.mxu0 %v1002
    %1200 = vmatprep.subr.bf16.mxu0 %v1006
    %1201 = vmatpush1.bf16.msra.mxu0 %v1005
    %1202 = vmatprep.subr.bf16.mxu0 %v1009
    %1203 = vmatpush1.bf16.msra.mxu0 %v1008
    %1204 = vmatprep.subr.bf16.mxu0 %v1012
    %1205 = vmatpush1.bf16.msra.mxu0 %v1011
    %1206 = vmatprep.subr.bf16.mxu0 %v1015
    %1207 = vmatpush1.bf16.msra.mxu0 %v1014
    %1208 = vmatprep.subr.bf16.mxu0 %v1018
    %1209 = vmatpush1.bf16.msra.mxu0 %v1017
    %1210 = vmatprep.subr.bf16.mxu0 %v1021
    %1211 = vmatpush1.bf16.msra.mxu0 %v1020
    %1212 = vmatprep.subr.bf16.mxu0 %v1024
    %1213 = vmatpush1.bf16.msra.mxu0 %v1023
    %1214 = vmatprep.subr.bf16.mxu0 %v1027
    %1215 = vmatpush1.bf16.msra.mxu0 %v1026
    %1216 = vmatprep.subr.bf16.mxu0 %v1030
    %1217 = vmatpush1.bf16.msra.mxu0 %v1029
    %1218 = vmatprep.mubr.bf16.mxu0 %v501
    %1219 = vmatmul.mubr.bf16.gmra.mrb[0].mxu0 %v500
    %v1220 = vpop.f32.mrb[0].mxu0
    %v1221 = vadd.f32 %v642, %v1220
    %v1222 = vpop.f32.mrb[0].mxu0
    %v1223 = vadd.f32 %v646, %v1222
    %v1224 = vpop.f32.mrb[0].mxu0
    %v1225 = vpop.f32.mrb[0].mxu0
    %1226 = vdwg.mxu0
    %1227 = vmatprep.subr.bf16.mxu0 %v1033
    %1228 = vmatpush1.bf16.msra.mxu0 %v1032
    %1229 = vmatprep.subr.bf16.mxu0 %v1036
    %1230 = vmatpush1.bf16.msra.mxu0 %v1035
    %1231 = vmatprep.subr.bf16.mxu0 %v1039
    %1232 = vmatpush1.bf16.msra.mxu0 %v1038
    %1233 = vmatprep.subr.bf16.mxu0 %v1042
    %1234 = vmatpush1.bf16.msra.mxu0 %v1041
    %1235 = vmatprep.subr.bf16.mxu0 %v1045
    %1236 = vmatpush1.bf16.msra.mxu0 %v1044
    %1237 = vmatprep.subr.bf16.mxu0 %v1048
    %1238 = vmatpush1.bf16.msra.mxu0 %v1047
    %1239 = vmatprep.subr.bf16.mxu0 %v1051
    %1240 = vmatpush1.bf16.msra.mxu0 %v1050
    %1241 = vmatprep.subr.bf16.mxu0 %v1054
    %1242 = vmatpush1.bf16.msra.mxu0 %v1053
    %1243 = vmatprep.subr.bf16.mxu0 %v1057
    %1244 = vmatpush1.bf16.msra.mxu0 %v1056
    %1245 = vmatprep.subr.bf16.mxu0 %v1060
    %1246 = vmatpush1.bf16.msra.mxu0 %v1059
    %1247 = vmatprep.subr.bf16.mxu0 %v1063
    %1248 = vmatpush1.bf16.msra.mxu0 %v1062
    %1249 = vmatprep.subr.bf16.mxu0 %v1066
    %1250 = vmatpush1.bf16.msra.mxu0 %v1065
    %1251 = vmatprep.subr.bf16.mxu0 %v1069
    %1252 = vmatpush1.bf16.msra.mxu0 %v1068
    %1253 = vmatprep.subr.bf16.mxu0 %v1072
    %1254 = vmatpush1.bf16.msra.mxu0 %v1071
    %1255 = vmatprep.subr.bf16.mxu0 %v1075
    %1256 = vmatpush1.bf16.msra.mxu0 %v1074
    %1257 = vmatprep.subr.bf16.mxu0 %v1078
    %1258 = vmatpush1.bf16.msra.mxu0 %v1077
    %1259 = vmatprep.mubr.bf16.mxu0 %v503
    %1260 = vmatmul.mubr.bf16.gmra.mrb[0].mxu0 %v502
    %v1261 = vpop.f32.mrb[0].mxu0
    %v1262 = vadd.f32 %v1221, %v1261
    %v1263 = vpop.f32.mrb[0].mxu0
    %v1264 = vadd.f32 %v1223, %v1263
    %v1265 = vpop.f32.mrb[0].mxu0
    %v1266 = vpop.f32.mrb[0].mxu0
    %1267 = vdwg.mxu0
    %1268 = vmatprep.subr.bf16.mxu0 %v1081
    %1269 = vmatpush1.bf16.msra.mxu0 %v1080
    %1270 = vmatprep.subr.bf16.mxu0 0
    %1271 = vmatpush1.bf16.msra.mxu0 0
    %1272 = vmatprep.subr.bf16.mxu0 0
    %1273 = vmatpush1.bf16.msra.mxu0 0
    %1274 = vmatprep.subr.bf16.mxu0 0
    %1275 = vmatpush1.bf16.msra.mxu0 0
    %1276 = vmatprep.subr.bf16.mxu0 0
    %1277 = vmatpush1.bf16.msra.mxu0 0
    %1278 = vmatprep.subr.bf16.mxu0 0
    %1279 = vmatpush1.bf16.msra.mxu0 0
    %1280 = vmatprep.subr.bf16.mxu0 0
    %1281 = vmatpush1.bf16.msra.mxu0 0
    %1282 = vmatprep.subr.bf16.mxu0 0
    %1283 = vmatpush1.bf16.msra.mxu0 0
    %1284 = vmatprep.subr.bf16.mxu0 0
    %1285 = vmatpush1.bf16.msra.mxu0 0
    %1286 = vmatprep.subr.bf16.mxu0 0
    %1287 = vmatpush1.bf16.msra.mxu0 0
    %1288 = vmatprep.subr.bf16.mxu0 0
    %1289 = vmatpush1.bf16.msra.mxu0 0
    %1290 = vmatprep.subr.bf16.mxu0 0
    %1291 = vmatpush1.bf16.msra.mxu0 0
    %1292 = vmatprep.subr.bf16.mxu0 0
    %1293 = vmatpush1.bf16.msra.mxu0 0
    %1294 = vmatprep.subr.bf16.mxu0 0
    %1295 = vmatpush1.bf16.msra.mxu0 0
    %1296 = vmatprep.subr.bf16.mxu0 0
    %1297 = vmatpush1.bf16.msra.mxu0 0
    %1298 = vmatprep.subr.bf16.mxu0 0
    %1299 = vmatpush1.bf16.msra.mxu0 0
    %1300 = vmatprep.mubr.bf16.mxu0 0
    %1301 = vmatmul.mubr.bf16.gmra.mrb[0].mxu0 %v1184
    %v1302 = vpop.f32.mrb[0].mxu0
    %v1303 = vadd.f32 %v1262, %v1302
    %v1304 = vpop.f32.mrb[0].mxu0
    %v1305 = vadd.f32 %v1264, %v1304
    %v1306 = vpop.f32.mrb[0].mxu0
    %v1307 = vpop.f32.mrb[0].mxu0
    %1308 = vdwg.mxu0
    %1309 = vmatprep.subr.bf16.mxu0 0
    %1310 = vmatpush1.bf16.msra.mxu0 %v986
    %1311 = vmatprep.subr.bf16.mxu0 0
    %1312 = vmatpush1.bf16.msra.mxu0 %v989
    %1313 = vmatprep.subr.bf16.mxu0 0
    %1314 = vmatpush1.bf16.msra.mxu0 %v992
    %1315 = vmatprep.subr.bf16.mxu0 0
    %1316 = vmatpush1.bf16.msra.mxu0 %v995
    %1317 = vmatprep.subr.bf16.mxu0 0
    %1318 = vmatpush1.bf16.msra.mxu0 %v998
    %1319 = vmatprep.subr.bf16.mxu0 0
    %1320 = vmatpush1.bf16.msra.mxu0 %v1001
    %1321 = vmatprep.subr.bf16.mxu0 0
    %1322 = vmatpush1.bf16.msra.mxu0 %v1004
    %1323 = vmatprep.subr.bf16.mxu0 0
    %1324 = vmatpush1.bf16.msra.mxu0 %v1007
    %1325 = vmatprep.subr.bf16.mxu0 0
    %1326 = vmatpush1.bf16.msra.mxu0 %v1010
    %1327 = vmatprep.subr.bf16.mxu0 0
    %1328 = vmatpush1.bf16.msra.mxu0 %v1013
    %1329 = vmatprep.subr.bf16.mxu0 0
    %1330 = vmatpush1.bf16.msra.mxu0 %v1016
    %1331 = vmatprep.subr.bf16.mxu0 0
    %1332 = vmatpush1.bf16.msra.mxu0 %v1019
    %1333 = vmatprep.subr.bf16.mxu0 0
    %1334 = vmatpush1.bf16.msra.mxu0 %v1022
    %1335 = vmatprep.subr.bf16.mxu0 0
    %1336 = vmatpush1.bf16.msra.mxu0 %v1025
    %1337 = vmatprep.subr.bf16.mxu0 0
    %1338 = vmatpush1.bf16.msra.mxu0 %v1028
    %1339 = vmatprep.subr.bf16.mxu0 0
    %1340 = vmatpush1.bf16.msra.mxu0 %v1031
    %1341 = vmatprep.mubr.bf16.mxu0 %v501
    %1342 = vmatmul.mubr.bf16.gmra.mrb[0].mxu0 %v500
    %v1343 = vpop.f32.mrb[0].mxu0
    %v1344 = vadd.f32 %v650, %v1343
    %v1345 = vpop.f32.mrb[0].mxu0
    %v1346 = vpop.f32.mrb[0].mxu0
    %v1347 = vpop.f32.mrb[0].mxu0
    %1348 = vdwg.mxu0
    %1349 = vmatprep.subr.bf16.mxu0 0
    %1350 = vmatpush1.bf16.msra.mxu0 %v1034
    %1351 = vmatprep.subr.bf16.mxu0 0
    %1352 = vmatpush1.bf16.msra.mxu0 %v1037
    %1353 = vmatprep.subr.bf16.mxu0 0
    %1354 = vmatpush1.bf16.msra.mxu0 %v1040
    %1355 = vmatprep.subr.bf16.mxu0 0
    %1356 = vmatpush1.bf16.msra.mxu0 %v1043
    %1357 = vmatprep.subr.bf16.mxu0 0
    %1358 = vmatpush1.bf16.msra.mxu0 %v1046
    %1359 = vmatprep.subr.bf16.mxu0 0
    %1360 = vmatpush1.bf16.msra.mxu0 %v1049
    %1361 = vmatprep.subr.bf16.mxu0 0
    %1362 = vmatpush1.bf16.msra.mxu0 %v1052
    %1363 = vmatprep.subr.bf16.mxu0 0
    %1364 = vmatpush1.bf16.msra.mxu0 %v1055
    %1365 = vmatprep.subr.bf16.mxu0 0
    %1366 = vmatpush1.bf16.msra.mxu0 %v1058
    %1367 = vmatprep.subr.bf16.mxu0 0
    %1368 = vmatpush1.bf16.msra.mxu0 %v1061
    %1369 = vmatprep.subr.bf16.mxu0 0
    %1370 = vmatpush1.bf16.msra.mxu0 %v1064
    %1371 = vmatprep.subr.bf16.mxu0 0
    %1372 = vmatpush1.bf16.msra.mxu0 %v1067
    %1373 = vmatprep.subr.bf16.mxu0 0
    %1374 = vmatpush1.bf16.msra.mxu0 %v1070
    %1375 = vmatprep.subr.bf16.mxu0 0
    %1376 = vmatpush1.bf16.msra.mxu0 %v1073
    %1377 = vmatprep.subr.bf16.mxu0 0
    %1378 = vmatpush1.bf16.msra.mxu0 %v1076
    %1379 = vmatprep.subr.bf16.mxu0 0
    %1380 = vmatpush1.bf16.msra.mxu0 %v1079
    %1381 = vmatprep.mubr.bf16.mxu0 %v503
    %1382 = vmatmul.mubr.bf16.gmra.mrb[0].mxu0 %v502
    %v1383 = vpop.f32.mrb[0].mxu0
    %v1384 = vadd.f32 %v1344, %v1383
    %v1385 = vpop.f32.mrb[0].mxu0
    %v1386 = vpop.f32.mrb[0].mxu0
    %v1387 = vpop.f32.mrb[0].mxu0
    %1388 = vdwg.mxu0
    %1389 = vmatprep.subr.bf16.mxu0 0
    %1390 = vmatpush1.bf16.msra.mxu0 %v1082
    %1391 = vmatprep.subr.bf16.mxu0 0
    %1392 = vmatpush1.bf16.msra.mxu0 0
    %1393 = vmatprep.subr.bf16.mxu0 0
    %1394 = vmatpush1.bf16.msra.mxu0 0
    %1395 = vmatprep.subr.bf16.mxu0 0
    %1396 = vmatpush1.bf16.msra.mxu0 0
    %1397 = vmatprep.subr.bf16.mxu0 0
    %1398 = vmatpush1.bf16.msra.mxu0 0
    %1399 = vmatprep.subr.bf16.mxu0 0
    %1400 = vmatpush1.bf16.msra.mxu0 0
    %1401 = vmatprep.subr.bf16.mxu0 0
    %1402 = vmatpush1.bf16.msra.mxu0 0
    %1403 = vmatprep.subr.bf16.mxu0 0
    %1404 = vmatpush1.bf16.msra.mxu0 0
    %1405 = vmatprep.subr.bf16.mxu0 0
    %1406 = vmatpush1.bf16.msra.mxu0 0
    %1407 = vmatprep.subr.bf16.mxu0 0
    %1408 = vmatpush1.bf16.msra.mxu0 0
    %1409 = vmatprep.subr.bf16.mxu0 0
    %1410 = vmatpush1.bf16.msra.mxu0 0
    %1411 = vmatprep.subr.bf16.mxu0 0
    %1412 = vmatpush1.bf16.msra.mxu0 0
    %1413 = vmatprep.subr.bf16.mxu0 0
    %1414 = vmatpush1.bf16.msra.mxu0 0
    %1415 = vmatprep.subr.bf16.mxu0 0
    %1416 = vmatpush1.bf16.msra.mxu0 0
    %1417 = vmatprep.subr.bf16.mxu0 0
    %1418 = vmatpush1.bf16.msra.mxu0 0
    %1419 = vmatprep.subr.bf16.mxu0 0
    %1420 = vmatpush1.bf16.msra.mxu0 0
    %1421 = vmatprep.mubr.bf16.mxu0 0
    %1422 = vmatmul.mubr.bf16.gmra.mrb[0].mxu0 %v1184
    %v1423 = vpop.f32.mrb[0].mxu0
    %v1424 = vadd.f32 %v1384, %v1423
    %v1425 = vpop.f32.mrb[0].mxu0
    %v1426 = vpop.f32.mrb[0].mxu0
    %v1427 = vpop.f32.mrb[0].mxu0
    %1428 = vdwg.mxu0
    %v1429 = vmax.f32 %v1303, 0.0
    %v1430 = vmax.f32 %v1305, 0.0
    %v1431 = vmax.f32 %v1424, 0.0
    %v1432 = vpack.c.bf16 %v1429, %v1429
    %v1433 = vpack.c.bf16 %v1430, %v1430
    %v1434 = vpack.c.bf16 %v1431, %v1431
    %v1435 = vld [vmem:[%s5] sm:$0xf]
    %v1436 = vld [vmem:[%s5 + $0x4] sm:$0xf]
    %v1437 = vld [vmem:[%s5 + $0x8] sm:$0xf]
    %v1438 = vld [vmem:[%s5 + $0xc] sm:$0xf]
    %v1439 = vld [vmem:[%s5 + $0x10] sm:$0xf]
    %v1440 = vld [vmem:[%s5 + $0x14] sm:$0xf]
    %v1441 = vld [vmem:[%s5 + $0x18] sm:$0xf]
    %v1442 = vld [vmem:[%s5 + $0x1c] sm:$0xf]
    %v1443 = vld [vmem:[%s5 + $0x20] sm:$0xf]
    %v1444 = vld [vmem:[%s5 + $0x24] sm:$0xf]
    %v1445 = vld [vmem:[%s5 + $0x28] sm:$0xf]
    %v1446 = vld [vmem:[%s5 + $0x2c] sm:$0xf]
    %v1447 = vld [vmem:[%s5 + $0x30] sm:$0xf]
    %v1448 = vld [vmem:[%s5 + $0x34] sm:$0xf]
    %v1449 = vld [vmem:[%s5 + $0x38] sm:$0xf]
    %v1450 = vld [vmem:[%s5 + $0x3c] sm:$0xf]
    %v1451 = vld [vmem:[%s5 + $0x40] sm:$0xf]
    %v1452 = vld [vmem:[%s5 + $0x44] sm:$0xf]
    %v1453 = vld [vmem:[%s5 + $0x48] sm:$0xf]
    %v1454 = vld [vmem:[%s5 + $0x4c] sm:$0xf]
    %v1455 = vld [vmem:[%s5 + $0x50] sm:$0xf]
    %v1456 = vld [vmem:[%s5 + $0x54] sm:$0xf]
    %v1457 = vld [vmem:[%s5 + $0x58] sm:$0xf]
    %v1458 = vld [vmem:[%s5 + $0x5c] sm:$0xf]
    %v1459 = vld [vmem:[%s5 + $0x60] sm:$0xf]
    %v1460 = vld [vmem:[%s5 + $0x64] sm:$0xf]
    %v1461 = vld [vmem:[%s5 + $0x68] sm:$0xf]
    %v1462 = vld [vmem:[%s5 + $0x6c] sm:$0xf]
    %v1463 = vld [vmem:[%s5 + $0x70] sm:$0xf]
    %v1464 = vld [vmem:[%s5 + $0x74] sm:$0xf]
    %v1465 = vld [vmem:[%s5 + $0x78] sm:$0xf]
    %v1466 = vld [vmem:[%s5 + $0x7c] sm:$0xf]
    %v1467 = vld [vmem:[%s5 + $0x80] sm:$0xf]
    %v1468 = vld [vmem:[%s6] sm:$0x1]
    %v1470 = vlaneseq
    %v1471 = vshrl.u32 %v1470, 7
    %v1472 = vsub.s32 0, %v1471
    %v1473 = vrot.slane %v1468, %v1472
    %v1508 = vunpack.c.l.b16 %v1435
    %v1509 = vunpack.c.l.b16 %v1436
    %v1510 = vunpack.c.l.b16 %v1437
    %v1511 = vunpack.c.l.b16 %v1438
    %v1512 = vunpack.c.l.b16 %v1439
    %v1513 = vunpack.c.l.b16 %v1440
    %v1514 = vunpack.c.l.b16 %v1441
    %v1515 = vunpack.c.l.b16 %v1442
    %v1516 = vunpack.c.l.b16 %v1443
    %v1517 = vunpack.c.l.b16 %v1444
    %v1518 = vunpack.c.l.b16 %v1445
    %v1519 = vunpack.c.l.b16 %v1446
    %v1520 = vunpack.c.l.b16 %v1447
    %v1521 = vunpack.c.l.b16 %v1448
    %v1522 = vunpack.c.l.b16 %v1449
    %v1523 = vunpack.c.l.b16 %v1450
    %v1524 = vunpack.c.l.b16 %v1451
    %v1525 = vunpack.c.l.b16 %v1452
    %v1526 = vunpack.c.l.b16 %v1453
    %v1527 = vunpack.c.l.b16 %v1454
    %v1528 = vunpack.c.l.b16 %v1455
    %v1529 = vunpack.c.l.b16 %v1456
    %v1530 = vunpack.c.l.b16 %v1457
    %v1531 = vunpack.c.l.b16 %v1458
    %v1532 = vunpack.c.l.b16 %v1459
    %v1533 = vunpack.c.l.b16 %v1460
    %v1534 = vunpack.c.l.b16 %v1461
    %v1535 = vunpack.c.l.b16 %v1462
    %v1536 = vunpack.c.l.b16 %v1463
    %v1537 = vunpack.c.l.b16 %v1464
    %v1538 = vunpack.c.l.b16 %v1465
    %v1539 = vunpack.c.l.b16 %v1466
    %v1540 = vunpack.c.l.b16 %v1467
    %v1541 = vpack.c.b16 %v1509, %v1508
    %v1542 = vpack.c.b16 %v1511, %v1510
    %v1543 = vpack.c.b16 %v1513, %v1512
    %v1544 = vpack.c.b16 %v1515, %v1514
    %v1545 = vpack.c.b16 %v1517, %v1516
    %v1546 = vpack.c.b16 %v1519, %v1518
    %v1547 = vpack.c.b16 %v1521, %v1520
    %v1548 = vpack.c.b16 %v1523, %v1522
    %v1549 = vpack.c.b16 %v1525, %v1524
    %v1550 = vpack.c.b16 %v1527, %v1526
    %v1551 = vpack.c.b16 %v1529, %v1528
    %v1552 = vpack.c.b16 %v1531, %v1530
    %v1553 = vpack.c.b16 %v1533, %v1532
    %v1554 = vpack.c.b16 %v1535, %v1534
    %v1555 = vpack.c.b16 %v1537, %v1536
    %v1556 = vpack.c.b16 %v1539, %v1538
    %v1557 = vpack.c.b16 %v1540, %v1540
    %vm1574 = vcmask 64512
    %v1576 = vsel %vm1574, %v1434, 0
    %vm1578 = vcmask 1043456
    %v1580 = vsel %vm1578, %v1557, 0
    %1582 = vmatprep.subr.bf16.mxu0 0
    %1583 = vmatpush1.bf16.msra.mxu0 %v1541
    %1584 = vmatprep.subr.bf16.mxu0 0
    %1585 = vmatpush1.bf16.msra.mxu0 %v1542
    %1586 = vmatprep.subr.bf16.mxu0 0
    %1587 = vmatpush1.bf16.msra.mxu0 %v1543
    %1588 = vmatprep.subr.bf16.mxu0 0
    %1589 = vmatpush1.bf16.msra.mxu0 %v1544
    %1590 = vmatprep.subr.bf16.mxu0 0
    %1591 = vmatpush1.bf16.msra.mxu0 %v1545
    %1592 = vmatprep.subr.bf16.mxu0 0
    %1593 = vmatpush1.bf16.msra.mxu0 %v1546
    %1594 = vmatprep.subr.bf16.mxu0 0
    %1595 = vmatpush1.bf16.msra.mxu0 %v1547
    %1596 = vmatprep.subr.bf16.mxu0 0
    %1597 = vmatpush1.bf16.msra.mxu0 %v1548
    %1598 = vmatprep.subr.bf16.mxu0 0
    %1599 = vmatpush1.bf16.msra.mxu0 %v1549
    %1600 = vmatprep.subr.bf16.mxu0 0
    %1601 = vmatpush1.bf16.msra.mxu0 %v1550
    %1602 = vmatprep.subr.bf16.mxu0 0
    %1603 = vmatpush1.bf16.msra.mxu0 %v1551
    %1604 = vmatprep.subr.bf16.mxu0 0
    %1605 = vmatpush1.bf16.msra.mxu0 %v1552
    %1606 = vmatprep.subr.bf16.mxu0 0
    %1607 = vmatpush1.bf16.msra.mxu0 %v1553
    %1608 = vmatprep.subr.bf16.mxu0 0
    %1609 = vmatpush1.bf16.msra.mxu0 %v1554
    %1610 = vmatprep.subr.bf16.mxu0 0
    %1611 = vmatpush1.bf16.msra.mxu0 %v1555
    %1612 = vmatprep.subr.bf16.mxu0 0
    %1613 = vmatpush1.bf16.msra.mxu0 %v1556
    %1614 = vmatprep.mubr.bf16.mxu0 %v1433
    %1615 = vmatmul.mubr.bf16.gmra.mrb[0].mxu0 %v1432
    %v1616 = vpop.f32.mrb[0].mxu0
    %v1617 = vadd.f32 %v1473, %v1616
    %v1618 = vpop.f32.mrb[0].mxu0
    %v1619 = vpop.f32.mrb[0].mxu0
    %v1620 = vpop.f32.mrb[0].mxu0
    %1621 = vdwg.mxu0
    %1622 = vmatprep.subr.bf16.mxu0 0
    %1623 = vmatpush1.bf16.msra.mxu0 %v1580
    %1624 = vmatprep.subr.bf16.mxu0 0
    %1625 = vmatpush1.bf16.msra.mxu0 0
    %1626 = vmatprep.subr.bf16.mxu0 0
    %1627 = vmatpush1.bf16.msra.mxu0 0
    %1628 = vmatprep.subr.bf16.mxu0 0
    %1629 = vmatpush1.bf16.msra.mxu0 0
    %1630 = vmatprep.subr.bf16.mxu0 0
    %1631 = vmatpush1.bf16.msra.mxu0 0
    %1632 = vmatprep.subr.bf16.mxu0 0
    %1633 = vmatpush1.bf16.msra.mxu0 0
    %1634 = vmatprep.subr.bf16.mxu0 0
    %1635 = vmatpush1.bf16.msra.mxu0 0
    %1636 = vmatprep.subr.bf16.mxu0 0
    %1637 = vmatpush1.bf16.msra.mxu0 0
    %1638 = vmatprep.subr.bf16.mxu0 0
    %1639 = vmatpush1.bf16.msra.mxu0 0
    %1640 = vmatprep.subr.bf16.mxu0 0
    %1641 = vmatpush1.bf16.msra.mxu0 0
    %1642 = vmatprep.subr.bf16.mxu0 0
    %1643 = vmatpush1.bf16.msra.mxu0 0
    %1644 = vmatprep.subr.bf16.mxu0 0
    %1645 = vmatpush1.bf16.msra.mxu0 0
    %1646 = vmatprep.subr.bf16.mxu0 0
    %1647 = vmatpush1.bf16.msra.mxu0 0
    %1648 = vmatprep.subr.bf16.mxu0 0
    %1649 = vmatpush1.bf16.msra.mxu0 0
    %1650 = vmatprep.subr.bf16.mxu0 0
    %1651 = vmatpush1.bf16.msra.mxu0 0
    %1652 = vmatprep.subr.bf16.mxu0 0
    %1653 = vmatpush1.bf16.msra.mxu0 0
    %1654 = vmatprep.mubr.bf16.mxu0 0
    %1655 = vmatmul.mubr.bf16.gmra.mrb[0].mxu0 %v1576
    %v1656 = vpop.f32.mrb[0].mxu0
    %v1657 = vadd.f32 %v1617, %v1656
    %v1658 = vpop.f32.mrb[0].mxu0
    %v1659 = vpop.f32.mrb[0].mxu0
    %v1660 = vpop.f32.mrb[0].mxu0
    %1661 = vdwg.mxu0
    %v1662 = vsub.f32 0.0, %v1657
    %v1663 = vmul.f32 %v1662, 1.442695
    %v1664 = vpow.pop %v1663
    %v1665 = vadd.f32 %v1664, 1.0
    %v1666 = vrcp.pop %v1665
    %v1667 = vpack.c.bf16 %v1666, %v1666
    %v1668 = vld [vmem:[%s7] sm:$0xff]
    %v1669 = vld [vmem:[%s7 + $0x8] sm:$0xff]
    %v1670 = vld [vmem:[%s7 + $0x10] sm:$0xf]
    %v1671 = vld [vmem:[%s7 + $0x14] sm:$0xff]
    %v1672 = vld [vmem:[%s7 + $0x1c] sm:$0xff]
    %v1673 = vld [vmem:[%s7 + $0x24] sm:$0xf]
    %v1674 = vld [vmem:[%s7 + $0x28] sm:$0xff]
    %v1675 = vld [vmem:[%s7 + $0x30] sm:$0xff]
    %v1676 = vld [vmem:[%s7 + $0x38] sm:$0xf]
    %v1677 = vld [vmem:[%s7 + $0x3c] sm:$0xff]
    %v1678 = vld [vmem:[%s7 + $0x44] sm:$0xff]
    %v1679 = vld [vmem:[%s7 + $0x4c] sm:$0xf]
    %v1680 = vld [vmem:[%s7 + $0x50] sm:$0xff]
    %v1681 = vld [vmem:[%s7 + $0x58] sm:$0xff]
    %v1682 = vld [vmem:[%s7 + $0x60] sm:$0xf]
    %v1683 = vld [vmem:[%s7 + $0x64] sm:$0xff]
    %v1684 = vld [vmem:[%s7 + $0x6c] sm:$0xff]
    %v1685 = vld [vmem:[%s7 + $0x74] sm:$0xf]
    %v1686 = vld [vmem:[%s7 + $0x78] sm:$0xff]
    %v1687 = vld [vmem:[%s7 + $0x80] sm:$0xff]
    %v1688 = vld [vmem:[%s7 + $0x88] sm:$0xf]
    %v1689 = vld [vmem:[%s7 + $0x8c] sm:$0xff]
    %v1690 = vld [vmem:[%s7 + $0x94] sm:$0xff]
    %v1691 = vld [vmem:[%s7 + $0x9c] sm:$0xf]
    %v1692 = vld [vmem:[%s7 + $0xa0] sm:$0xff]
    %v1693 = vld [vmem:[%s7 + $0xa8] sm:$0xff]
    %v1694 = vld [vmem:[%s7 + $0xb0] sm:$0xf]
    %v1695 = vld [vmem:[%s7 + $0xb4] sm:$0xff]
    %v1696 = vld [vmem:[%s7 + $0xbc] sm:$0xff]
    %v1697 = vld [vmem:[%s7 + $0xc4] sm:$0xf]
    %v1698 = vld [vmem:[%s7 + $0xc8] sm:$0xff]
    %v1699 = vld [vmem:[%s7 + $0xd0] sm:$0xff]
    %v1700 = vld [vmem:[%s7 + $0xd8] sm:$0xf]
    %v1701 = vld [vmem:[%s7 + $0xdc] sm:$0xff]
    %v1702 = vld [vmem:[%s7 + $0xe4] sm:$0xff]
    %v1703 = vld [vmem:[%s7 + $0xec] sm:$0xf]
    %v1704 = vld [vmem:[%s7 + $0xf0] sm:$0xff]
    %v1705 = vld [vmem:[%s7 + $0xf8] sm:$0xff]
    %v1706 = vld [vmem:[%s7 + $0x100] sm:$0xf]
    %v1707 = vld [vmem:[%s7 + $0x104] sm:$0xff]
    %v1708 = vld [vmem:[%s7 + $0x10c] sm:$0xff]
    %v1709 = vld [vmem:[%s7 + $0x114] sm:$0xf]
    %v1710 = vld [vmem:[%s7 + $0x118] sm:$0xff]
    %v1711 = vld [vmem:[%s7 + $0x120] sm:$0xff]
    %v1712 = vld [vmem:[%s7 + $0x128] sm:$0xf]
    %v1713 = vld [vmem:[%s7 + $0x12c] sm:$0xff]
    %v1714 = vld [vmem:[%s7 + $0x134] sm:$0xff]
    %v1715 = vld [vmem:[%s7 + $0x13c] sm:$0xf]
    %v1764 = vunpack.c.l.b16 %v1668
    %v1765 = vunpack.c.h.b16 %v1668
    %v1766 = vunpack.c.l.b16 %v1669
    %v1767 = vunpack.c.h.b16 %v1669
    %v1768 = vunpack.c.l.b16 %v1670
    %v1769 = vunpack.c.l.b16 %v1671
    %v1770 = vunpack.c.h.b16 %v1671
    %v1771 = vunpack.c.l.b16 %v1672
    %v1772 = vunpack.c.h.b16 %v1672
    %v1773 = vunpack.c.l.b16 %v1673
    %v1774 = vunpack.c.l.b16 %v1674
    %v1775 = vunpack.c.h.b16 %v1674
    %v1776 = vunpack.c.l.b16 %v1675
    %v1777 = vunpack.c.h.b16 %v1675
    %v1778 = vunpack.c.l.b16 %v1676
    %v1779 = vunpack.c.l.b16 %v1677
    %v1780 = vunpack.c.h.b16 %v1677
    %v1781 = vunpack.c.l.b16 %v1678
    %v1782 = vunpack.c.h.b16 %v1678
    %v1783 = vunpack.c.l.b16 %v1679
    %v1784 = vunpack.c.l.b16 %v1680
    %v1785 = vunpack.c.h.b16 %v1680
    %v1786 = vunpack.c.l.b16 %v1681
    %v1787 = vunpack.c.h.b16 %v1681
    %v1788 = vunpack.c.l.b16 %v1682
    %v1789 = vunpack.c.l.b16 %v1683
    %v1790 = vunpack.c.h.b16 %v1683
    %v1791 = vunpack.c.l.b16 %v1684
    %v1792 = vunpack.c.h.b16 %v1684
    %v1793 = vunpack.c.l.b16 %v1685
    %v1794 = vunpack.c.l.b16 %v1686
    %v1795 = vunpack.c.h.b16 %v1686
    %v1796 = vunpack.c.l.b16 %v1687
    %v1797 = vunpack.c.h.b16 %v1687
    %v1798 = vunpack.c.l.b16 %v1688
    %v1799 = vunpack.c.l.b16 %v1689
    %v1800 = vunpack.c.h.b16 %v1689
    %v1801 = vunpack.c.l.b16 %v1690
    %v1802 = vunpack.c.h.b16 %v1690
    %v1803 = vunpack.c.l.b16 %v1691
    %v1804 = vunpack.c.l.b16 %v1692
    %v1805 = vunpack.c.h.b16 %v1692
    %v1806 = vunpack.c.l.b16 %v1693
    %v1807 = vunpack.c.h.b16 %v1693
    %v1808 = vunpack.c.l.b16 %v1694
    %v1809 = vunpack.c.l.b16 %v1695
    %v1810 = vunpack.c.h.b16 %v1695
    %v1811 = vunpack.c.l.b16 %v1696
    %v1812 = vunpack.c.h.b16 %v1696
    %v1813 = vunpack.c.l.b16 %v1697
    %v1814 = vunpack.c.l.b16 %v1698
    %v1815 = vunpack.c.h.b16 %v1698
    %v1816 = vunpack.c.l.b16 %v1699
    %v1817 = vunpack.c.h.b16 %v1699
    %v1818 = vunpack.c.l.b16 %v1700
    %v1819 = vunpack.c.l.b16 %v1701
    %v1820 = vunpack.c.h.b16 %v1701
    %v1821 = vunpack.c.l.b16 %v1702
    %v1822 = vunpack.c.h.b16 %v1702
    %v1823 = vunpack.c.l.b16 %v1703
    %v1824 = vunpack.c.l.b16 %v1704
    %v1825 = vunpack.c.h.b16 %v1704
    %v1826 = vunpack.c.l.b16 %v1705
    %v1827 = vunpack.c.h.b16 %v1705
    %v1828 = vunpack.c.l.b16 %v1706
    %v1829 = vunpack.c.l.b16 %v1707
    %v1830 = vunpack.c.h.b16 %v1707
    %v1831 = vunpack.c.l.b16 %v1708
    %v1832 = vunpack.c.h.b16 %v1708
    %v1833 = vunpack.c.l.b16 %v1709
    %v1834 = vunpack.c.l.b16 %v1710
    %v1835 = vunpack.c.h.b16 %v1710
    %v1836 = vunpack.c.l.b16 %v1711
    %v1837 = vunpack.c.h.b16 %v1711
    %v1838 = vunpack.c.l.b16 %v1712
    %v1839 = vunpack.c.l.b16 %v1713
    %v1840 = vunpack.c.h.b16 %v1713
    %v1841 = vunpack.c.l.b16 %v1714
    %v1842 = vunpack.c.h.b16 %v1714
    %v1843 = vunpack.c.l.b16 %v1715
    %v1844 = vpack.c.b16 %v1769, %v1764
    %v1845 = vpack.c.b16 %v1770, %v1765
    %v1846 = vpack.c.b16 %v1771, %v1766
    %v1847 = vpack.c.b16 %v1772, %v1767
    %v1848 = vpack.c.b16 %v1773, %v1768
    %v1849 = vpack.c.b16 %v1779, %v1774
    %v1850 = vpack.c.b16 %v1780, %v1775
    %v1851 = vpack.c.b16 %v1781, %v1776
    %v1852 = vpack.c.b16 %v1782, %v1777
    %v1853 = vpack.c.b16 %v1783, %v1778
    %v1854 = vpack.c.b16 %v1789, %v1784
    %v1855 = vpack.c.b16 %v1790, %v1785
    %v1856 = vpack.c.b16 %v1791, %v1786
    %v1857 = vpack.c.b16 %v1792, %v1787
    %v1858 = vpack.c.b16 %v1793, %v1788
    %v1859 = vpack.c.b16 %v1799, %v1794
    %v1860 = vpack.c.b16 %v1800, %v1795
    %v1861 = vpack.c.b16 %v1801, %v1796
    %v1862 = vpack.c.b16 %v1802, %v1797
    %v1863 = vpack.c.b16 %v1803, %v1798
    %v1864 = vpack.c.b16 %v1809, %v1804
    %v1865 = vpack.c.b16 %v1810, %v1805
    %v1866 = vpack.c.b16 %v1811, %v1806
    %v1867 = vpack.c.b16 %v1812, %v1807
    %v1868 = vpack.c.b16 %v1813, %v1808
    %v1869 = vpack.c.b16 %v1819, %v1814
    %v1870 = vpack.c.b16 %v1820, %v1815
    %v1871 = vpack.c.b16 %v1821, %v1816
    %v1872 = vpack.c.b16 %v1822, %v1817
    %v1873 = vpack.c.b16 %v1823, %v1818
    %v1874 = vpack.c.b16 %v1829, %v1824
    %v1875 = vpack.c.b16 %v1830, %v1825
    %v1876 = vpack.c.b16 %v1831, %v1826
    %v1877 = vpack.c.b16 %v1832, %v1827
    %v1878 = vpack.c.b16 %v1833, %v1828
    %v1879 = vpack.c.b16 %v1839, %v1834
    %v1880 = vpack.c.b16 %v1840, %v1835
    %v1881 = vpack.c.b16 %v1841, %v1836
    %v1882 = vpack.c.b16 %v1842, %v1837
    %v1883 = vpack.c.b16 %v1843, %v1838
    %1924 = vmatprep.subr.bf16.mxu0 %v1845
    %1925 = vmatpush1.bf16.msra.mxu0 %v1844
    %1926 = vmatprep.subr.bf16.mxu0 %v1850
    %1927 = vmatpush1.bf16.msra.mxu0 %v1849
    %1928 = vmatprep.subr.bf16.mxu0 %v1855
    %1929 = vmatpush1.bf16.msra.mxu0 %v1854
    %1930 = vmatprep.subr.bf16.mxu0 %v1860
    %1931 = vmatpush1.bf16.msra.mxu0 %v1859
    %1932 = vmatprep.subr.bf16.mxu0 %v1865
    %1933 = vmatpush1.bf16.msra.mxu0 %v1864
    %1934 = vmatprep.subr.bf16.mxu0 %v1870
    %1935 = vmatpush1.bf16.msra.mxu0 %v1869
    %1936 = vmatprep.subr.bf16.mxu0 %v1875
    %1937 = vmatpush1.bf16.msra.mxu0 %v1874
    %1938 = vmatprep.subr.bf16.mxu0 %v1880
    %1939 = vmatpush1.bf16.msra.mxu0 %v1879
    %1940 = vmatprep.subr.bf16.mxu0 0
    %1941 = vmatpush1.bf16.msra.mxu0 0
    %1942 = vmatprep.subr.bf16.mxu0 0
    %1943 = vmatpush1.bf16.msra.mxu0 0
    %1944 = vmatprep.subr.bf16.mxu0 0
    %1945 = vmatpush1.bf16.msra.mxu0 0
    %1946 = vmatprep.subr.bf16.mxu0 0
    %1947 = vmatpush1.bf16.msra.mxu0 0
    %1948 = vmatprep.subr.bf16.mxu0 0
    %1949 = vmatpush1.bf16.msra.mxu0 0
    %1950 = vmatprep.subr.bf16.mxu0 0
    %1951 = vmatpush1.bf16.msra.mxu0 0
    %1952 = vmatprep.subr.bf16.mxu0 0
    %1953 = vmatpush1.bf16.msra.mxu0 0
    %1954 = vmatprep.subr.bf16.mxu0 0
    %1955 = vmatpush1.bf16.msra.mxu0 0
    %1956 = vmatprep.mubr.bf16.mxu0 0
    %1957 = vmatmul.mubr.bf16.gmra.mrb[0].mxu0 %v1667
    %v1958 = vpop.f32.mrb[0].mxu0
    %v1959 = vadd.f32 0.0, %v1958
    %v1960 = vpop.f32.mrb[0].mxu0
    %v1961 = vadd.f32 0.0, %v1960
    %v1962 = vpop.f32.mrb[0].mxu0
    %v1963 = vpop.f32.mrb[0].mxu0
    %1964 = vdwg.mxu0
    %1965 = vmatprep.subr.bf16.mxu0 %v1847
    %1966 = vmatpush1.bf16.msra.mxu0 %v1846
    %1967 = vmatprep.subr.bf16.mxu0 %v1852
    %1968 = vmatpush1.bf16.msra.mxu0 %v1851
    %1969 = vmatprep.subr.bf16.mxu0 %v1857
    %1970 = vmatpush1.bf16.msra.mxu0 %v1856
    %1971 = vmatprep.subr.bf16.mxu0 %v1862
    %1972 = vmatpush1.bf16.msra.mxu0 %v1861
    %1973 = vmatprep.subr.bf16.mxu0 %v1867
    %1974 = vmatpush1.bf16.msra.mxu0 %v1866
    %1975 = vmatprep.subr.bf16.mxu0 %v1872
    %1976 = vmatpush1.bf16.msra.mxu0 %v1871
    %1977 = vmatprep.subr.bf16.mxu0 %v1877
    %1978 = vmatpush1.bf16.msra.mxu0 %v1876
    %1979 = vmatprep.subr.bf16.mxu0 %v1882
    %1980 = vmatpush1.bf16.msra.mxu0 %v1881
    %1981 = vmatprep.subr.bf16.mxu0 0
    %1982 = vmatpush1.bf16.msra.mxu0 0
    %1983 = vmatprep.subr.bf16.mxu0 0
    %1984 = vmatpush1.bf16.msra.mxu0 0
    %1985 = vmatprep.subr.bf16.mxu0 0
    %1986 = vmatpush1.bf16.msra.mxu0 0
    %1987 = vmatprep.subr.bf16.mxu0 0
    %1988 = vmatpush1.bf16.msra.mxu0 0
    %1989 = vmatprep.subr.bf16.mxu0 0
    %1990 = vmatpush1.bf16.msra.mxu0 0
    %1991 = vmatprep.subr.bf16.mxu0 0
    %1992 = vmatpush1.bf16.msra.mxu0 0
    %1993 = vmatprep.subr.bf16.mxu0 0
    %1994 = vmatpush1.bf16.msra.mxu0 0
    %1995 = vmatprep.subr.bf16.mxu0 0
    %1996 = vmatpush1.bf16.msra.mxu0 0
    %1997 = vmatprep.mubr.bf16.mxu0 0
    %1998 = vmatmul.mubr.bf16.gmra.mrb[0].mxu0 %v1667
    %v1999 = vpop.f32.mrb[0].mxu0
    %v2000 = vadd.f32 0.0, %v1999
    %v2001 = vpop.f32.mrb[0].mxu0
    %v2002 = vadd.f32 0.0, %v2001
    %v2003 = vpop.f32.mrb[0].mxu0
    %v2004 = vpop.f32.mrb[0].mxu0
    %2005 = vdwg.mxu0
    %2006 = vmatprep.subr.bf16.mxu0 0
    %2007 = vmatpush1.bf16.msra.mxu0 %v1848
    %2008 = vmatprep.subr.bf16.mxu0 0
    %2009 = vmatpush1.bf16.msra.mxu0 %v1853
    %2010 = vmatprep.subr.bf16.mxu0 0
    %2011 = vmatpush1.bf16.msra.mxu0 %v1858
    %2012 = vmatprep.subr.bf16.mxu0 0
    %2013 = vmatpush1.bf16.msra.mxu0 %v1863
    %2014 = vmatprep.subr.bf16.mxu0 0
    %2015 = vmatpush1.bf16.msra.mxu0 %v1868
    %2016 = vmatprep.subr.bf16.mxu0 0
    %2017 = vmatpush1.bf16.msra.mxu0 %v1873
    %2018 = vmatprep.subr.bf16.mxu0 0
    %2019 = vmatpush1.bf16.msra.mxu0 %v1878
    %2020 = vmatprep.subr.bf16.mxu0 0
    %2021 = vmatpush1.bf16.msra.mxu0 %v1883
    %2022 = vmatprep.subr.bf16.mxu0 0
    %2023 = vmatpush1.bf16.msra.mxu0 0
    %2024 = vmatprep.subr.bf16.mxu0 0
    %2025 = vmatpush1.bf16.msra.mxu0 0
    %2026 = vmatprep.subr.bf16.mxu0 0
    %2027 = vmatpush1.bf16.msra.mxu0 0
    %2028 = vmatprep.subr.bf16.mxu0 0
    %2029 = vmatpush1.bf16.msra.mxu0 0
    %2030 = vmatprep.subr.bf16.mxu0 0
    %2031 = vmatpush1.bf16.msra.mxu0 0
    %2032 = vmatprep.subr.bf16.mxu0 0
    %2033 = vmatpush1.bf16.msra.mxu0 0
    %2034 = vmatprep.subr.bf16.mxu0 0
    %2035 = vmatpush1.bf16.msra.mxu0 0
    %2036 = vmatprep.subr.bf16.mxu0 0
    %2037 = vmatpush1.bf16.msra.mxu0 0
    %2038 = vmatprep.mubr.bf16.mxu0 0
    %2039 = vmatmul.mubr.bf16.gmra.mrb[0].mxu0 %v1667
    %v2040 = vpop.f32.mrb[0].mxu0
    %v2041 = vadd.f32 0.0, %v2040
    %v2042 = vpop.f32.mrb[0].mxu0
    %v2043 = vpop.f32.mrb[0].mxu0
    %v2044 = vpop.f32.mrb[0].mxu0
    %2045 = vdwg.mxu0
    %v2046 = vmul.f32 %v413, %v1959
    %v2047 = vmul.f32 %v415, %v1961
    %v2048 = vmul.f32 %v454, %v2000
    %v2049 = vmul.f32 %v456, %v2002
    %v2050 = vmul.f32 %v495, %v2041
    %v2051 = vpack.c.bf16 %v2046, %v2046
    %v2052 = vpack.c.bf16 %v2047, %v2047
    %v2053 = vpack.c.bf16 %v2048, %v2048
    %v2054 = vpack.c.bf16 %v2049, %v2049
    %v2055 = vpack.c.bf16 %v2050, %v2050
    %v2056 = vld [vmem:[%s8] sm:$0xff]
    %v2057 = vld [vmem:[%s8 + $0x8] sm:$0xff]
    %v2058 = vld [vmem:[%s8 + $0x10] sm:$0xff]
    %v2059 = vld [vmem:[%s8 + $0x18] sm:$0xff]
    %v2060 = vld [vmem:[%s8 + $0x20] sm:$0xff]
    %v2061 = vld [vmem:[%s8 + $0x28] sm:$0xff]
    %v2062 = vld [vmem:[%s8 + $0x30] sm:$0xff]
    %v2063 = vld [vmem:[%s8 + $0x38] sm:$0xff]
    %v2064 = vld [vmem:[%s8 + $0x40] sm:$0xff]
    %v2065 = vld [vmem:[%s8 + $0x48] sm:$0xff]
    %v2066 = vld [vmem:[%s8 + $0x50] sm:$0xff]
    %v2067 = vld [vmem:[%s8 + $0x58] sm:$0xff]
    %v2068 = vld [vmem:[%s8 + $0x60] sm:$0xff]
    %v2069 = vld [vmem:[%s8 + $0x68] sm:$0xff]
    %v2070 = vld [vmem:[%s8 + $0x70] sm:$0xff]
    %v2071 = vld [vmem:[%s8 + $0x78] sm:$0xff]
    %v2072 = vld [vmem:[%s8 + $0x80] sm:$0xff]
    %v2073 = vld [vmem:[%s8 + $0x88] sm:$0xff]
    %v2074 = vld [vmem:[%s8 + $0x90] sm:$0xff]
    %v2075 = vld [vmem:[%s8 + $0x98] sm:$0xff]
    %v2076 = vld [vmem:[%s8 + $0xa0] sm:$0xff]
    %v2077 = vld [vmem:[%s8 + $0xa8] sm:$0xff]
    %v2078 = vld [vmem:[%s8 + $0xb0] sm:$0xff]
    %v2079 = vld [vmem:[%s8 + $0xb8] sm:$0xff]
    %v2080 = vld [vmem:[%s8 + $0xc0] sm:$0xff]
    %v2081 = vld [vmem:[%s8 + $0xc8] sm:$0xff]
    %v2082 = vld [vmem:[%s8 + $0xd0] sm:$0xff]
    %v2083 = vld [vmem:[%s8 + $0xd8] sm:$0xff]
    %v2084 = vld [vmem:[%s8 + $0xe0] sm:$0xff]
    %v2085 = vld [vmem:[%s8 + $0xe8] sm:$0xff]
    %v2086 = vld [vmem:[%s8 + $0xf0] sm:$0xff]
    %v2087 = vld [vmem:[%s8 + $0xf8] sm:$0xff]
    %v2088 = vld [vmem:[%s8 + $0x100] sm:$0xff]
    %v2089 = vld [vmem:[%s8 + $0x108] sm:$0xff]
    %v2090 = vld [vmem:[%s8 + $0x110] sm:$0xff]
    %v2091 = vld [vmem:[%s8 + $0x118] sm:$0xff]
    %v2092 = vld [vmem:[%s8 + $0x120] sm:$0xff]
    %v2093 = vld [vmem:[%s8 + $0x128] sm:$0xff]
    %v2094 = vld [vmem:[%s8 + $0x130] sm:$0xff]
    %v2095 = vld [vmem:[%s8 + $0x138] sm:$0xff]
    %v2096 = vld [vmem:[%s8 + $0x140] sm:$0xff]
    %v2097 = vld [vmem:[%s8 + $0x148] sm:$0xff]
    %v2098 = vld [vmem:[%s8 + $0x150] sm:$0xff]
    %v2099 = vld [vmem:[%s8 + $0x158] sm:$0xff]
    %v2100 = vld [vmem:[%s8 + $0x160] sm:$0xff]
    %v2101 = vld [vmem:[%s8 + $0x168] sm:$0xff]
    %v2102 = vld [vmem:[%s8 + $0x170] sm:$0xff]
    %v2103 = vld [vmem:[%s8 + $0x178] sm:$0xff]
    %v2104 = vld [vmem:[%s8 + $0x180] sm:$0xff]
    %v2105 = vld [vmem:[%s8 + $0x188] sm:$0xff]
    %v2106 = vld [vmem:[%s8 + $0x190] sm:$0xff]
    %v2107 = vld [vmem:[%s8 + $0x198] sm:$0xff]
    %v2108 = vld [vmem:[%s8 + $0x1a0] sm:$0xff]
    %v2109 = vld [vmem:[%s8 + $0x1a8] sm:$0xff]
    %v2110 = vld [vmem:[%s8 + $0x1b0] sm:$0xff]
    %v2111 = vld [vmem:[%s8 + $0x1b8] sm:$0xff]
    %v2112 = vld [vmem:[%s8 + $0x1c0] sm:$0xff]
    %v2113 = vld [vmem:[%s8 + $0x1c8] sm:$0xff]
    %v2114 = vld [vmem:[%s8 + $0x1d0] sm:$0xff]
    %v2115 = vld [vmem:[%s8 + $0x1d8] sm:$0xff]
    %v2116 = vld [vmem:[%s8 + $0x1e0] sm:$0xff]
    %v2117 = vld [vmem:[%s8 + $0x1e8] sm:$0xff]
    %v2118 = vld [vmem:[%s8 + $0x1f0] sm:$0xff]
    %v2119 = vld [vmem:[%s8 + $0x1f8] sm:$0xff]
    %v2120 = vld [vmem:[%s8 + $0x200] sm:$0xff]
    %v2121 = vld [vmem:[%s8 + $0x208] sm:$0xff]
    %v2122 = vld [vmem:[%s9] sm:$0x3]
    %v2124 = vlaneseq
    %v2125 = vshrl.u32 %v2124, 7
    %v2126 = vsub.s32 0, %v2125
    %v2127 = vrot.slane %v2122, %v2126
    %v2128 = vlaneseq
    %v2129 = vshrl.u32 %v2128, 7
    %v2130 = vsub.s32 1, %v2129
    %v2131 = vrot.slane %v2122, %v2130
    %v2200 = vunpack.c.l.b16 %v2056
    %v2201 = vunpack.c.h.b16 %v2056
    %v2202 = vunpack.c.l.b16 %v2057
    %v2203 = vunpack.c.h.b16 %v2057
    %v2204 = vunpack.c.l.b16 %v2058
    %v2205 = vunpack.c.h.b16 %v2058
    %v2206 = vunpack.c.l.b16 %v2059
    %v2207 = vunpack.c.h.b16 %v2059
    %v2208 = vunpack.c.l.b16 %v2060
    %v2209 = vunpack.c.h.b16 %v2060
    %v2210 = vunpack.c.l.b16 %v2061
    %v2211 = vunpack.c.h.b16 %v2061
    %v2212 = vunpack.c.l.b16 %v2062
    %v2213 = vunpack.c.h.b16 %v2062
    %v2214 = vunpack.c.l.b16 %v2063
    %v2215 = vunpack.c.h.b16 %v2063
    %v2216 = vunpack.c.l.b16 %v2064
    %v2217 = vunpack.c.h.b16 %v2064
    %v2218 = vunpack.c.l.b16 %v2065
    %v2219 = vunpack.c.h.b16 %v2065
    %v2220 = vunpack.c.l.b16 %v2066
    %v2221 = vunpack.c.h.b16 %v2066
    %v2222 = vunpack.c.l.b16 %v2067
    %v2223 = vunpack.c.h.b16 %v2067
    %v2224 = vunpack.c.l.b16 %v2068
    %v2225 = vunpack.c.h.b16 %v2068
    %v2226 = vunpack.c.l.b16 %v2069
    %v2227 = vunpack.c.h.b16 %v2069
    %v2228 = vunpack.c.l.b16 %v2070
    %v2229 = vunpack.c.h.b16 %v2070
    %v2230 = vunpack.c.l.b16 %v2071
    %v2231 = vunpack.c.h.b16 %v2071
    %v2232 = vunpack.c.l.b16 %v2072
    %v2233 = vunpack.c.h.b16 %v2072
    %v2234 = vunpack.c.l.b16 %v2073
    %v2235 = vunpack.c.h.b16 %v2073
    %v2236 = vunpack.c.l.b16 %v2074
    %v2237 = vunpack.c.h.b16 %v2074
    %v2238 = vunpack.c.l.b16 %v2075
    %v2239 = vunpack.c.h.b16 %v2075
    %v2240 = vunpack.c.l.b16 %v2076
    %v2241 = vunpack.c.h.b16 %v2076
    %v2242 = vunpack.c.l.b16 %v2077
    %v2243 = vunpack.c.h.b16 %v2077
    %v2244 = vunpack.c.l.b16 %v2078
    %v2245 = vunpack.c.h.b16 %v2078
    %v2246 = vunpack.c.l.b16 %v2079
    %v2247 = vunpack.c.h.b16 %v2079
    %v2248 = vunpack.c.l.b16 %v2080
    %v2249 = vunpack.c.h.b16 %v2080
    %v2250 = vunpack.c.l.b16 %v2081
    %v2251 = vunpack.c.h.b16 %v2081
    %v2252 = vunpack.c.l.b16 %v2082
    %v2253 = vunpack.c.h.b16 %v2082
    %v2254 = vunpack.c.l.b16 %v2083
    %v2255 = vunpack.c.h.b16 %v2083
    %v2256 = vunpack.c.l.b16 %v2084
    %v2257 = vunpack.c.h.b16 %v2084
    %v2258 = vunpack.c.l.b16 %v2085
    %v2259 = vunpack.c.h.b16 %v2085
    %v2260 = vunpack.c.l.b16 %v2086
    %v2261 = vunpack.c.h.b16 %v2086
    %v2262 = vunpack.c.l.b16 %v2087
    %v2263 = vunpack.c.h.b16 %v2087
    %v2264 = vunpack.c.l.b16 %v2088
    %v2265 = vunpack.c.h.b16 %v2088
    %v2266 = vunpack.c.l.b16 %v2089
    %v2267 = vunpack.c.h.b16 %v2089
    %v2268 = vunpack.c.l.b16 %v2090
    %v2269 = vunpack.c.h.b16 %v2090
    %v2270 = vunpack.c.l.b16 %v2091
    %v2271 = vunpack.c.h.b16 %v2091
    %v2272 = vunpack.c.l.b16 %v2092
    %v2273 = vunpack.c.h.b16 %v2092
    %v2274 = vunpack.c.l.b16 %v2093
    %v2275 = vunpack.c.h.b16 %v2093
    %v2276 = vunpack.c.l.b16 %v2094
    %v2277 = vunpack.c.h.b16 %v2094
    %v2278 = vunpack.c.l.b16 %v2095
    %v2279 = vunpack.c.h.b16 %v2095
    %v2280 = vunpack.c.l.b16 %v2096
    %v2281 = vunpack.c.h.b16 %v2096
    %v2282 = vunpack.c.l.b16 %v2097
    %v2283 = vunpack.c.h.b16 %v2097
    %v2284 = vunpack.c.l.b16 %v2098
    %v2285 = vunpack.c.h.b16 %v2098
    %v2286 = vunpack.c.l.b16 %v2099
    %v2287 = vunpack.c.h.b16 %v2099
    %v2288 = vunpack.c.l.b16 %v2100
    %v2289 = vunpack.c.h.b16 %v2100
    %v2290 = vunpack.c.l.b16 %v2101
    %v2291 = vunpack.c.h.b16 %v2101
    %v2292 = vunpack.c.l.b16 %v2102
    %v2293 = vunpack.c.h.b16 %v2102
    %v2294 = vunpack.c.l.b16 %v2103
    %v2295 = vunpack.c.h.b16 %v2103
    %v2296 = vunpack.c.l.b16 %v2104
    %v2297 = vunpack.c.h.b16 %v2104
    %v2298 = vunpack.c.l.b16 %v2105
    %v2299 = vunpack.c.h.b16 %v2105
    %v2300 = vunpack.c.l.b16 %v2106
    %v2301 = vunpack.c.h.b16 %v2106
    %v2302 = vunpack.c.l.b16 %v2107
    %v2303 = vunpack.c.h.b16 %v2107
    %v2304 = vunpack.c.l.b16 %v2108
    %v2305 = vunpack.c.h.b16 %v2108
    %v2306 = vunpack.c.l.b16 %v2109
    %v2307 = vunpack.c.h.b16 %v2109
    %v2308 = vunpack.c.l.b16 %v2110
    %v2309 = vunpack.c.h.b16 %v2110
    %v2310 = vunpack.c.l.b16 %v2111
    %v2311 = vunpack.c.h.b16 %v2111
    %v2312 = vunpack.c.l.b16 %v2112
    %v2313 = vunpack.c.h.b16 %v2112
    %v2314 = vunpack.c.l.b16 %v2113
    %v2315 = vunpack.c.h.b16 %v2113
    %v2316 = vunpack.c.l.b16 %v2114
    %v2317 = vunpack.c.h.b16 %v2114
    %v2318 = vunpack.c.l.b16 %v2115
    %v2319 = vunpack.c.h.b16 %v2115
    %v2320 = vunpack.c.l.b16 %v2116
    %v2321 = vunpack.c.h.b16 %v2116
    %v2322 = vunpack.c.l.b16 %v2117
    %v2323 = vunpack.c.h.b16 %v2117
    %v2324 = vunpack.c.l.b16 %v2118
    %v2325 = vunpack.c.h.b16 %v2118
    %v2326 = vunpack.c.l.b16 %v2119
    %v2327 = vunpack.c.h.b16 %v2119
    %v2328 = vunpack.c.l.b16 %v2120
    %v2329 = vunpack.c.h.b16 %v2120
    %v2330 = vunpack.c.l.b16 %v2121
    %v2331 = vunpack.c.h.b16 %v2121
    %v2332 = vpack.c.b16 %v2202, %v2200
    %v2333 = vpack.c.b16 %v2203, %v2201
    %v2334 = vpack.c.b16 %v2206, %v2204
    %v2335 = vpack.c.b16 %v2207, %v2205
    %v2336 = vpack.c.b16 %v2210, %v2208
    %v2337 = vpack.c.b16 %v2211, %v2209
    %v2338 = vpack.c.b16 %v2214, %v2212
    %v2339 = vpack.c.b16 %v2215, %v2213
    %v2340 = vpack.c.b16 %v2218, %v2216
    %v2341 = vpack.c.b16 %v2219, %v2217
    %v2342 = vpack.c.b16 %v2222, %v2220
    %v2343 = vpack.c.b16 %v2223, %v2221
    %v2344 = vpack.c.b16 %v2226, %v2224
    %v2345 = vpack.c.b16 %v2227, %v2225
    %v2346 = vpack.c.b16 %v2230, %v2228
    %v2347 = vpack.c.b16 %v2231, %v2229
    %v2348 = vpack.c.b16 %v2234, %v2232
    %v2349 = vpack.c.b16 %v2235, %v2233
    %v2350 = vpack.c.b16 %v2238, %v2236
    %v2351 = vpack.c.b16 %v2239, %v2237
    %v2352 = vpack.c.b16 %v2242, %v2240
    %v2353 = vpack.c.b16 %v2243, %v2241
    %v2354 = vpack.c.b16 %v2246, %v2244
    %v2355 = vpack.c.b16 %v2247, %v2245
    %v2356 = vpack.c.b16 %v2250, %v2248
    %v2357 = vpack.c.b16 %v2251, %v2249
    %v2358 = vpack.c.b16 %v2254, %v2252
    %v2359 = vpack.c.b16 %v2255, %v2253
    %v2360 = vpack.c.b16 %v2258, %v2256
    %v2361 = vpack.c.b16 %v2259, %v2257
    %v2362 = vpack.c.b16 %v2262, %v2260
    %v2363 = vpack.c.b16 %v2263, %v2261
    %v2364 = vpack.c.b16 %v2266, %v2264
    %v2365 = vpack.c.b16 %v2267, %v2265
    %v2366 = vpack.c.b16 %v2270, %v2268
    %v2367 = vpack.c.b16 %v2271, %v2269
    %v2368 = vpack.c.b16 %v2274, %v2272
    %v2369 = vpack.c.b16 %v2275, %v2273
    %v2370 = vpack.c.b16 %v2278, %v2276
    %v2371 = vpack.c.b16 %v2279, %v2277
    %v2372 = vpack.c.b16 %v2282, %v2280
    %v2373 = vpack.c.b16 %v2283, %v2281
    %v2374 = vpack.c.b16 %v2286, %v2284
    %v2375 = vpack.c.b16 %v2287, %v2285
    %v2376 = vpack.c.b16 %v2290, %v2288
    %v2377 = vpack.c.b16 %v2291, %v2289
    %v2378 = vpack.c.b16 %v2294, %v2292
    %v2379 = vpack.c.b16 %v2295, %v2293
    %v2380 = vpack.c.b16 %v2298, %v2296
    %v2381 = vpack.c.b16 %v2299, %v2297
    %v2382 = vpack.c.b16 %v2302, %v2300
    %v2383 = vpack.c.b16 %v2303, %v2301
    %v2384 = vpack.c.b16 %v2306, %v2304
    %v2385 = vpack.c.b16 %v2307, %v2305
    %v2386 = vpack.c.b16 %v2310, %v2308
    %v2387 = vpack.c.b16 %v2311, %v2309
    %v2388 = vpack.c.b16 %v2314, %v2312
    %v2389 = vpack.c.b16 %v2315, %v2313
    %v2390 = vpack.c.b16 %v2318, %v2316
    %v2391 = vpack.c.b16 %v2319, %v2317
    %v2392 = vpack.c.b16 %v2322, %v2320
    %v2393 = vpack.c.b16 %v2323, %v2321
    %v2394 = vpack.c.b16 %v2326, %v2324
    %v2395 = vpack.c.b16 %v2327, %v2325
    %v2396 = vpack.c.b16 %v2330, %v2328
    %v2397 = vpack.c.b16 %v2331, %v2329
    %v2465 = vsel %vm1182, %v2055, 0
    %2467 = vmatprep.subr.bf16.mxu0 %v2333
    %2468 = vmatpush1.bf16.msra.mxu0 %v2332
    %2469 = vmatprep.subr.bf16.mxu0 %v2335
    %2470 = vmatpush1.bf16.msra.mxu0 %v2334
    %2471 = vmatprep.subr.bf16.mxu0 %v2337
    %2472 = vmatpush1.bf16.msra.mxu0 %v2336
    %2473 = vmatprep.subr.bf16.mxu0 %v2339
    %2474 = vmatpush1.bf16.msra.mxu0 %v2338
    %2475 = vmatprep.subr.bf16.mxu0 %v2341
    %2476 = vmatpush1.bf16.msra.mxu0 %v2340
    %2477 = vmatprep.subr.bf16.mxu0 %v2343
    %2478 = vmatpush1.bf16.msra.mxu0 %v2342
    %2479 = vmatprep.subr.bf16.mxu0 %v2345
    %2480 = vmatpush1.bf16.msra.mxu0 %v2344
    %2481 = vmatprep.subr.bf16.mxu0 %v2347
    %2482 = vmatpush1.bf16.msra.mxu0 %v2346
    %2483 = vmatprep.subr.bf16.mxu0 %v2349
    %2484 = vmatpush1.bf16.msra.mxu0 %v2348
    %2485 = vmatprep.subr.bf16.mxu0 %v2351
    %2486 = vmatpush1.bf16.msra.mxu0 %v2350
    %2487 = vmatprep.subr.bf16.mxu0 %v2353
    %2488 = vmatpush1.bf16.msra.mxu0 %v2352
    %2489 = vmatprep.subr.bf16.mxu0 %v2355
    %2490 = vmatpush1.bf16.msra.mxu0 %v2354
    %2491 = vmatprep.subr.bf16.mxu0 %v2357
    %2492 = vmatpush1.bf16.msra.mxu0 %v2356
    %2493 = vmatprep.subr.bf16.mxu0 %v2359
    %2494 = vmatpush1.bf16.msra.mxu0 %v2358
    %2495 = vmatprep.subr.bf16.mxu0 %v2361
    %2496 = vmatpush1.bf16.msra.mxu0 %v2360
    %2497 = vmatprep.subr.bf16.mxu0 %v2363
    %2498 = vmatpush1.bf16.msra.mxu0 %v2362
    %2499 = vmatprep.mubr.bf16.mxu0 %v2052
    %2500 = vmatmul.mubr.bf16.gmra.mrb[0].mxu0 %v2051
    %v2501 = vpop.f32.mrb[0].mxu0
    %v2502 = vadd.f32 %v2127, %v2501
    %v2503 = vpop.f32.mrb[0].mxu0
    %v2504 = vadd.f32 %v2131, %v2503
    %v2505 = vpop.f32.mrb[0].mxu0
    %v2506 = vpop.f32.mrb[0].mxu0
    %2507 = vdwg.mxu0
    %2508 = vmatprep.subr.bf16.mxu0 %v2365
    %2509 = vmatpush1.bf16.msra.mxu0 %v2364
    %2510 = vmatprep.subr.bf16.mxu0 %v2367
    %2511 = vmatpush1.bf16.msra.mxu0 %v2366
    %2512 = vmatprep.subr.bf16.mxu0 %v2369
    %2513 = vmatpush1.bf16.msra.mxu0 %v2368
    %2514 = vmatprep.subr.bf16.mxu0 %v2371
    %2515 = vmatpush1.bf16.msra.mxu0 %v2370
    %2516 = vmatprep.subr.bf16.mxu0 %v2373
    %2517 = vmatpush1.bf16.msra.mxu0 %v2372
    %2518 = vmatprep.subr.bf16.mxu0 %v2375
    %2519 = vmatpush1.bf16.msra.mxu0 %v2374
    %2520 = vmatprep.subr.bf16.mxu0 %v2377
    %2521 = vmatpush1.bf16.msra.mxu0 %v2376
    %2522 = vmatprep.subr.bf16.mxu0 %v2379
    %2523 = vmatpush1.bf16.msra.mxu0 %v2378
    %2524 = vmatprep.subr.bf16.mxu0 %v2381
    %2525 = vmatpush1.bf16.msra.mxu0 %v2380
    %2526 = vmatprep.subr.bf16.mxu0 %v2383
    %2527 = vmatpush1.bf16.msra.mxu0 %v2382
    %2528 = vmatprep.subr.bf16.mxu0 %v2385
    %2529 = vmatpush1.bf16.msra.mxu0 %v2384
    %2530 = vmatprep.subr.bf16.mxu0 %v2387
    %2531 = vmatpush1.bf16.msra.mxu0 %v2386
    %2532 = vmatprep.subr.bf16.mxu0 %v2389
    %2533 = vmatpush1.bf16.msra.mxu0 %v2388
    %2534 = vmatprep.subr.bf16.mxu0 %v2391
    %2535 = vmatpush1.bf16.msra.mxu0 %v2390
    %2536 = vmatprep.subr.bf16.mxu0 %v2393
    %2537 = vmatpush1.bf16.msra.mxu0 %v2392
    %2538 = vmatprep.subr.bf16.mxu0 %v2395
    %2539 = vmatpush1.bf16.msra.mxu0 %v2394
    %2540 = vmatprep.mubr.bf16.mxu0 %v2054
    %2541 = vmatmul.mubr.bf16.gmra.mrb[0].mxu0 %v2053
    %v2542 = vpop.f32.mrb[0].mxu0
    %v2543 = vadd.f32 %v2502, %v2542
    %v2544 = vpop.f32.mrb[0].mxu0
    %v2545 = vadd.f32 %v2504, %v2544
    %v2546 = vpop.f32.mrb[0].mxu0
    %v2547 = vpop.f32.mrb[0].mxu0
    %2548 = vdwg.mxu0
    %2549 = vmatprep.subr.bf16.mxu0 %v2397
    %2550 = vmatpush1.bf16.msra.mxu0 %v2396
    %2551 = vmatprep.subr.bf16.mxu0 0
    %2552 = vmatpush1.bf16.msra.mxu0 0
    %2553 = vmatprep.subr.bf16.mxu0 0
    %2554 = vmatpush1.bf16.msra.mxu0 0
    %2555 = vmatprep.subr.bf16.mxu0 0
    %2556 = vmatpush1.bf16.msra.mxu0 0
    %2557 = vmatprep.subr.bf16.mxu0 0
    %2558 = vmatpush1.bf16.msra.mxu0 0
    %2559 = vmatprep.subr.bf16.mxu0 0
    %2560 = vmatpush1.bf16.msra.mxu0 0
    %2561 = vmatprep.subr.bf16.mxu0 0
    %2562 = vmatpush1.bf16.msra.mxu0 0
    %2563 = vmatprep.subr.bf16.mxu0 0
    %2564 = vmatpush1.bf16.msra.mxu0 0
    %2565 = vmatprep.subr.bf16.mxu0 0
    %2566 = vmatpush1.bf16.msra.mxu0 0
    %2567 = vmatprep.subr.bf16.mxu0 0
    %2568 = vmatpush1.bf16.msra.mxu0 0
    %2569 = vmatprep.subr.bf16.mxu0 0
    %2570 = vmatpush1.bf16.msra.mxu0 0
    %2571 = vmatprep.subr.bf16.mxu0 0
    %2572 = vmatpush1.bf16.msra.mxu0 0
    %2573 = vmatprep.subr.bf16.mxu0 0
    %2574 = vmatpush1.bf16.msra.mxu0 0
    %2575 = vmatprep.subr.bf16.mxu0 0
    %2576 = vmatpush1.bf16.msra.mxu0 0
    %2577 = vmatprep.subr.bf16.mxu0 0
    %2578 = vmatpush1.bf16.msra.mxu0 0
    %2579 = vmatprep.subr.bf16.mxu0 0
    %2580 = vmatpush1.bf16.msra.mxu0 0
    %2581 = vmatprep.mubr.bf16.mxu0 0
    %2582 = vmatmul.mubr.bf16.gmra.mrb[0].mxu0 %v2465
    %v2583 = vpop.f32.mrb[0].mxu0
    %v2584 = vadd.f32 %v2543, %v2583
    %v2585 = vpop.f32.mrb[0].mxu0
    %v2586 = vadd.f32 %v2545, %v2585
    %v2587 = vpop.f32.mrb[0].mxu0
    %v2588 = vpop.f32.mrb[0].mxu0
    %2589 = vdwg.mxu0
    %v2590 = vmax.f32 %v2584, 0.0
    %v2591 = vmax.f32 %v2586, 0.0
    %v2592 = vpack.c.bf16 %v2590, %v2590
    %v2593 = vpack.c.bf16 %v2591, %v2591
    %v2594 = vld [vmem:[%s10] sm:$0xf]
    %v2595 = vld [vmem:[%s10 + $0x4] sm:$0xf]
    %v2596 = vld [vmem:[%s10 + $0x8] sm:$0xf]
    %v2597 = vld [vmem:[%s10 + $0xc] sm:$0xf]
    %v2598 = vld [vmem:[%s10 + $0x10] sm:$0xf]
    %v2599 = vld [vmem:[%s10 + $0x14] sm:$0xf]
    %v2600 = vld [vmem:[%s10 + $0x18] sm:$0xf]
    %v2601 = vld [vmem:[%s10 + $0x1c] sm:$0xf]
    %v2602 = vld [vmem:[%s10 + $0x20] sm:$0xf]
    %v2603 = vld [vmem:[%s10 + $0x24] sm:$0xf]
    %v2604 = vld [vmem:[%s10 + $0x28] sm:$0xf]
    %v2605 = vld [vmem:[%s10 + $0x2c] sm:$0xf]
    %v2606 = vld [vmem:[%s10 + $0x30] sm:$0xf]
    %v2607 = vld [vmem:[%s10 + $0x34] sm:$0xf]
    %v2608 = vld [vmem:[%s10 + $0x38] sm:$0xf]
    %v2609 = vld [vmem:[%s10 + $0x3c] sm:$0xf]
    %v2610 = vld [vmem:[%s10 + $0x40] sm:$0xf]
    %v2611 = vld [vmem:[%s10 + $0x44] sm:$0xf]
    %v2612 = vld [vmem:[%s10 + $0x48] sm:$0xf]
    %v2613 = vld [vmem:[%s10 + $0x4c] sm:$0xf]
    %v2614 = vld [vmem:[%s10 + $0x50] sm:$0xf]
    %v2615 = vld [vmem:[%s10 + $0x54] sm:$0xf]
    %v2616 = vld [vmem:[%s10 + $0x58] sm:$0xf]
    %v2617 = vld [vmem:[%s10 + $0x5c] sm:$0xf]
    %v2618 = vld [vmem:[%s10 + $0x60] sm:$0xf]
    %v2619 = vld [vmem:[%s10 + $0x64] sm:$0xf]
    %v2620 = vld [vmem:[%s10 + $0x68] sm:$0xf]
    %v2621 = vld [vmem:[%s10 + $0x6c] sm:$0xf]
    %v2622 = vld [vmem:[%s10 + $0x70] sm:$0xf]
    %v2623 = vld [vmem:[%s10 + $0x74] sm:$0xf]
    %v2624 = vld [vmem:[%s10 + $0x78] sm:$0xf]
    %v2625 = vld [vmem:[%s10 + $0x7c] sm:$0xf]
    %v2626 = vld [vmem:[%s11] sm:$0x1]
    %v2628 = vlaneseq
    %v2629 = vshrl.u32 %v2628, 7
    %v2630 = vsub.s32 0, %v2629
    %v2631 = vrot.slane %v2626, %v2630
    %v2665 = vunpack.c.l.b16 %v2594
    %v2666 = vunpack.c.l.b16 %v2595
    %v2667 = vunpack.c.l.b16 %v2596
    %v2668 = vunpack.c.l.b16 %v2597
    %v2669 = vunpack.c.l.b16 %v2598
    %v2670 = vunpack.c.l.b16 %v2599
    %v2671 = vunpack.c.l.b16 %v2600
    %v2672 = vunpack.c.l.b16 %v2601
    %v2673 = vunpack.c.l.b16 %v2602
    %v2674 = vunpack.c.l.b16 %v2603
    %v2675 = vunpack.c.l.b16 %v2604
    %v2676 = vunpack.c.l.b16 %v2605
    %v2677 = vunpack.c.l.b16 %v2606
    %v2678 = vunpack.c.l.b16 %v2607
    %v2679 = vunpack.c.l.b16 %v2608
    %v2680 = vunpack.c.l.b16 %v2609
    %v2681 = vunpack.c.l.b16 %v2610
    %v2682 = vunpack.c.l.b16 %v2611
    %v2683 = vunpack.c.l.b16 %v2612
    %v2684 = vunpack.c.l.b16 %v2613
    %v2685 = vunpack.c.l.b16 %v2614
    %v2686 = vunpack.c.l.b16 %v2615
    %v2687 = vunpack.c.l.b16 %v2616
    %v2688 = vunpack.c.l.b16 %v2617
    %v2689 = vunpack.c.l.b16 %v2618
    %v2690 = vunpack.c.l.b16 %v2619
    %v2691 = vunpack.c.l.b16 %v2620
    %v2692 = vunpack.c.l.b16 %v2621
    %v2693 = vunpack.c.l.b16 %v2622
    %v2694 = vunpack.c.l.b16 %v2623
    %v2695 = vunpack.c.l.b16 %v2624
    %v2696 = vunpack.c.l.b16 %v2625
    %v2697 = vpack.c.b16 %v2666, %v2665
    %v2698 = vpack.c.b16 %v2668, %v2667
    %v2699 = vpack.c.b16 %v2670, %v2669
    %v2700 = vpack.c.b16 %v2672, %v2671
    %v2701 = vpack.c.b16 %v2674, %v2673
    %v2702 = vpack.c.b16 %v2676, %v2675
    %v2703 = vpack.c.b16 %v2678, %v2677
    %v2704 = vpack.c.b16 %v2680, %v2679
    %v2705 = vpack.c.b16 %v2682, %v2681
    %v2706 = vpack.c.b16 %v2684, %v2683
    %v2707 = vpack.c.b16 %v2686, %v2685
    %v2708 = vpack.c.b16 %v2688, %v2687
    %v2709 = vpack.c.b16 %v2690, %v2689
    %v2710 = vpack.c.b16 %v2692, %v2691
    %v2711 = vpack.c.b16 %v2694, %v2693
    %v2712 = vpack.c.b16 %v2696, %v2695
    %2729 = vmatprep.subr.bf16.mxu0 0
    %2730 = vmatpush1.bf16.msra.mxu0 %v2697
    %2731 = vmatprep.subr.bf16.mxu0 0
    %2732 = vmatpush1.bf16.msra.mxu0 %v2698
    %2733 = vmatprep.subr.bf16.mxu0 0
    %2734 = vmatpush1.bf16.msra.mxu0 %v2699
    %2735 = vmatprep.subr.bf16.mxu0 0
    %2736 = vmatpush1.bf16.msra.mxu0 %v2700
    %2737 = vmatprep.subr.bf16.mxu0 0
    %2738 = vmatpush1.bf16.msra.mxu0 %v2701
    %2739 = vmatprep.subr.bf16.mxu0 0
    %2740 = vmatpush1.bf16.msra.mxu0 %v2702
    %2741 = vmatprep.subr.bf16.mxu0 0
    %2742 = vmatpush1.bf16.msra.mxu0 %v2703
    %2743 = vmatprep.subr.bf16.mxu0 0
    %2744 = vmatpush1.bf16.msra.mxu0 %v2704
    %2745 = vmatprep.subr.bf16.mxu0 0
    %2746 = vmatpush1.bf16.msra.mxu0 %v2705
    %2747 = vmatprep.subr.bf16.mxu0 0
    %2748 = vmatpush1.bf16.msra.mxu0 %v2706
    %2749 = vmatprep.subr.bf16.mxu0 0
    %2750 = vmatpush1.bf16.msra.mxu0 %v2707
    %2751 = vmatprep.subr.bf16.mxu0 0
    %2752 = vmatpush1.bf16.msra.mxu0 %v2708
    %2753 = vmatprep.subr.bf16.mxu0 0
    %2754 = vmatpush1.bf16.msra.mxu0 %v2709
    %2755 = vmatprep.subr.bf16.mxu0 0
    %2756 = vmatpush1.bf16.msra.mxu0 %v2710
    %2757 = vmatprep.subr.bf16.mxu0 0
    %2758 = vmatpush1.bf16.msra.mxu0 %v2711
    %2759 = vmatprep.subr.bf16.mxu0 0
    %2760 = vmatpush1.bf16.msra.mxu0 %v2712
    %2761 = vmatprep.mubr.bf16.mxu0 %v2593
    %2762 = vmatmul.mubr.bf16.gmra.mrb[0].mxu0 %v2592
    %v2763 = vpop.f32.mrb[0].mxu0
    %v2764 = vadd.f32 %v2631, %v2763
    %v2765 = vpop.f32.mrb[0].mxu0
    %v2766 = vpop.f32.mrb[0].mxu0
    %v2767 = vpop.f32.mrb[0].mxu0
    %2768 = vdwg.mxu0
    %v2769 = vmax.f32 %v2764, 0.0
    %v2770 = vpack.c.bf16 %v2769, %v2769
    %v2771 = vld [vmem:[%s12] sm:$0xf]
    %v2772 = vld [vmem:[%s12 + $0x4] sm:$0xf]
    %v2773 = vld [vmem:[%s12 + $0x8] sm:$0xf]
    %v2774 = vld [vmem:[%s12 + $0xc] sm:$0xf]
    %v2775 = vld [vmem:[%s12 + $0x10] sm:$0xf]
    %v2776 = vld [vmem:[%s12 + $0x14] sm:$0xf]
    %v2777 = vld [vmem:[%s12 + $0x18] sm:$0xf]
    %v2778 = vld [vmem:[%s12 + $0x1c] sm:$0xf]
    %v2779 = vld [vmem:[%s12 + $0x20] sm:$0xf]
    %v2780 = vld [vmem:[%s12 + $0x24] sm:$0xf]
    %v2781 = vld [vmem:[%s12 + $0x28] sm:$0xf]
    %v2782 = vld [vmem:[%s12 + $0x2c] sm:$0xf]
    %v2783 = vld [vmem:[%s12 + $0x30] sm:$0xf]
    %v2784 = vld [vmem:[%s12 + $0x34] sm:$0xf]
    %v2785 = vld [vmem:[%s12 + $0x38] sm:$0xf]
    %v2786 = vld [vmem:[%s12 + $0x3c] sm:$0xf]
    %v2787 = vld [vmem:[%s13] sm:$0x1]
    %v2789 = vlaneseq
    %v2790 = vshrl.u32 %v2789, 7
    %v2791 = vsub.s32 0, %v2790
    %v2792 = vrot.slane %v2787, %v2791
    %v2810 = vunpack.c.l.b16 %v2771
    %v2811 = vunpack.c.l.b16 %v2772
    %v2812 = vunpack.c.l.b16 %v2773
    %v2813 = vunpack.c.l.b16 %v2774
    %v2814 = vunpack.c.l.b16 %v2775
    %v2815 = vunpack.c.l.b16 %v2776
    %v2816 = vunpack.c.l.b16 %v2777
    %v2817 = vunpack.c.l.b16 %v2778
    %v2818 = vunpack.c.l.b16 %v2779
    %v2819 = vunpack.c.l.b16 %v2780
    %v2820 = vunpack.c.l.b16 %v2781
    %v2821 = vunpack.c.l.b16 %v2782
    %v2822 = vunpack.c.l.b16 %v2783
    %v2823 = vunpack.c.l.b16 %v2784
    %v2824 = vunpack.c.l.b16 %v2785
    %v2825 = vunpack.c.l.b16 %v2786
    %v2826 = vpack.c.b16 %v2811, %v2810
    %v2827 = vpack.c.b16 %v2813, %v2812
    %v2828 = vpack.c.b16 %v2815, %v2814
    %v2829 = vpack.c.b16 %v2817, %v2816
    %v2830 = vpack.c.b16 %v2819, %v2818
    %v2831 = vpack.c.b16 %v2821, %v2820
    %v2832 = vpack.c.b16 %v2823, %v2822
    %v2833 = vpack.c.b16 %v2825, %v2824
    %2842 = vmatprep.subr.bf16.mxu0 0
    %2843 = vmatpush1.bf16.msra.mxu0 %v2826
    %2844 = vmatprep.subr.bf16.mxu0 0
    %2845 = vmatpush1.bf16.msra.mxu0 %v2827
    %2846 = vmatprep.subr.bf16.mxu0 0
    %2847 = vmatpush1.bf16.msra.mxu0 %v2828
    %2848 = vmatprep.subr.bf16.mxu0 0
    %2849 = vmatpush1.bf16.msra.mxu0 %v2829
    %2850 = vmatprep.subr.bf16.mxu0 0
    %2851 = vmatpush1.bf16.msra.mxu0 %v2830
    %2852 = vmatprep.subr.bf16.mxu0 0
    %2853 = vmatpush1.bf16.msra.mxu0 %v2831
    %2854 = vmatprep.subr.bf16.mxu0 0
    %2855 = vmatpush1.bf16.msra.mxu0 %v2832
    %2856 = vmatprep.subr.bf16.mxu0 0
    %2857 = vmatpush1.bf16.msra.mxu0 %v2833
    %2858 = vmatprep.subr.bf16.mxu0 0
    %2859 = vmatpush1.bf16.msra.mxu0 0
    %2860 = vmatprep.subr.bf16.mxu0 0
    %2861 = vmatpush1.bf16.msra.mxu0 0
    %2862 = vmatprep.subr.bf16.mxu0 0
    %2863 = vmatpush1.bf16.msra.mxu0 0
    %2864 = vmatprep.subr.bf16.mxu0 0
    %2865 = vmatpush1.bf16.msra.mxu0 0
    %2866 = vmatprep.subr.bf16.mxu0 0
    %2867 = vmatpush1.bf16.msra.mxu0 0
    %2868 = vmatprep.subr.bf16.mxu0 0
    %2869 = vmatpush1.bf16.msra.mxu0 0
    %2870 = vmatprep.subr.bf16.mxu0 0
    %2871 = vmatpush1.bf16.msra.mxu0 0
    %2872 = vmatprep.subr.bf16.mxu0 0
    %2873 = vmatpush1.bf16.msra.mxu0 0
    %2874 = vmatprep.mubr.bf16.mxu0 0
    %2875 = vmatmul.mubr.bf16.gmra.mrb[0].mxu0 %v2770
    %v2876 = vpop.f32.mrb[0].mxu0
    %v2877 = vadd.f32 %v2792, %v2876
    %v2878 = vpop.f32.mrb[0].mxu0
    %v2879 = vpop.f32.mrb[0].mxu0
    %v2880 = vpop.f32.mrb[0].mxu0
    %2881 = vdwg.mxu0
    %v2882 = vmax.f32 %v2877, 0.0
    %v2883 = vpack.c.bf16 %v2882, %v2882
    %v2884 = vld [vmem:[%s14] sm:$0xf]
    %v2885 = vld [vmem:[%s14 + $0x4] sm:$0xf]
    %v2886 = vld [vmem:[%s14 + $0x8] sm:$0xf]
    %v2887 = vld [vmem:[%s14 + $0xc] sm:$0xf]
    %v2888 = vld [vmem:[%s14 + $0x10] sm:$0xf]
    %v2889 = vld [vmem:[%s14 + $0x14] sm:$0xf]
    %v2890 = vld [vmem:[%s14 + $0x18] sm:$0xf]
    %v2891 = vld [vmem:[%s14 + $0x1c] sm:$0xf]
    %v2892 = vld [vmem:[%s15] sm:$0x1]
    %v2894 = vlaneseq
    %v2895 = vshrl.u32 %v2894, 7
    %v2896 = vsub.s32 0, %v2895
    %v2897 = vrot.slane %v2892, %v2896
    %v2907 = vunpack.c.l.b16 %v2884
    %v2908 = vunpack.c.l.b16 %v2885
    %v2909 = vunpack.c.l.b16 %v2886
    %v2910 = vunpack.c.l.b16 %v2887
    %v2911 = vunpack.c.l.b16 %v2888
    %v2912 = vunpack.c.l.b16 %v2889
    %v2913 = vunpack.c.l.b16 %v2890
    %v2914 = vunpack.c.l.b16 %v2891
    %v2915 = vpack.c.b16 %v2908, %v2907
    %v2916 = vpack.c.b16 %v2910, %v2909
    %v2917 = vpack.c.b16 %v2912, %v2911
    %v2918 = vpack.c.b16 %v2914, %v2913
    %vm2923 = vcmask 523264
    %v2925 = vsel %vm2923, %v2883, 0
    %2927 = vmatprep.subr.bf16.mxu0 0
    %2928 = vmatpush1.bf16.msra.mxu0 %v2915
    %2929 = vmatprep.subr.bf16.mxu0 0
    %2930 = vmatpush1.bf16.msra.mxu0 %v2916
    %2931 = vmatprep.subr.bf16.mxu0 0
    %2932 = vmatpush1.bf16.msra.mxu0 %v2917
    %2933 = vmatprep.subr.bf16.mxu0 0
    %2934 = vmatpush1.bf16.msra.mxu0 %v2918
    %2935 = vmatprep.subr.bf16.mxu0 0
    %2936 = vmatpush1.bf16.msra.mxu0 0
    %2937 = vmatprep.subr.bf16.mxu0 0
    %2938 = vmatpush1.bf16.msra.mxu0 0
    %2939 = vmatprep.subr.bf16.mxu0 0
    %2940 = vmatpush1.bf16.msra.mxu0 0
    %2941 = vmatprep.subr.bf16.mxu0 0
    %2942 = vmatpush1.bf16.msra.mxu0 0
    %2943 = vmatprep.subr.bf16.mxu0 0
    %2944 = vmatpush1.bf16.msra.mxu0 0
    %2945 = vmatprep.subr.bf16.mxu0 0
    %2946 = vmatpush1.bf16.msra.mxu0 0
    %2947 = vmatprep.subr.bf16.mxu0 0
    %2948 = vmatpush1.bf16.msra.mxu0 0
    %2949 = vmatprep.subr.bf16.mxu0 0
    %2950 = vmatpush1.bf16.msra.mxu0 0
    %2951 = vmatprep.subr.bf16.mxu0 0
    %2952 = vmatpush1.bf16.msra.mxu0 0
    %2953 = vmatprep.subr.bf16.mxu0 0
    %2954 = vmatpush1.bf16.msra.mxu0 0
    %2955 = vmatprep.subr.bf16.mxu0 0
    %2956 = vmatpush1.bf16.msra.mxu0 0
    %2957 = vmatprep.subr.bf16.mxu0 0
    %2958 = vmatpush1.bf16.msra.mxu0 0
    %2959 = vmatprep.mubr.bf16.mxu0 0
    %2960 = vmatmul.mubr.bf16.gmra.mrb[0].mxu0 %v2925
    %v2961 = vpop.f32.mrb[0].mxu0
    %v2962 = vadd.f32 %v2897, %v2961
    %v2963 = vpop.f32.mrb[0].mxu0
    %v2964 = vpop.f32.mrb[0].mxu0
    %v2965 = vpop.f32.mrb[0].mxu0
    %2966 = vdwg.mxu0
    %2967 = vst [vmem:[#allocation2] sm:$0xff] %v2962
    // Predicated region
    $region66: #{_forward_impl.1} parent=1 // pred_check
      _
    $region67: #{_forward_impl.1} parent=1 // pred_check_branch
      %2969 = sbr.rel (0) target = $region69
    $region68: #{_forward_impl.1} parent=1 // pred_region
      %s2971 = ssub.s32 128, 128
      %2972 = vsyncadd [#allocation3], %s2971
      %s2974 = sshll.u32 [#allocation2], 4
      %s2975 = int_to_ptr.vmem [resolvable:$true] %s2974
      %2977 = dma.vmem_to_hbm [thread:$0]  %s2975, 128, %s16, [#allocation3]
    $region69: #{_forward_impl.1} parent=1 // pred_fallthru
      _
    // Predicated region
    $region70: #{_forward_impl.1} parent=1 // pred_check
      _
    $region71: #{_forward_impl.1} parent=1 // pred_check_branch
      %2979 = sbr.rel (0) target = $region73
    $region72: #{_forward_impl.1} parent=1 // pred_region
      %2980 = dma.done [#allocation3], 128
    $region73: #{_forward_impl.1} parent=1 // pred_fallthru
      _
    %2981 = vsyncpa [#allocation3], 1

</llo_original>
